<compile_context>
chip_gen: v7x
topology: tpu7x:2x2x1
jax: 0.10.0
libtpu: 0.0.40
codegen_flags: <defaults>
</compile_context>

<pallas_src>
import math
from functools import partial

import jax
import jax.numpy as jnp
from jax.experimental import pallas as pl
from jax.experimental.pallas import tpu as pltpu


# Row indices inside the packed [8, C] vector slab.
_GR, _BR = 0, 1          # reduction LayerNorm gamma / beta
_BO = 2                  # attention output projection bias
_G1, _B1 = 3, 4          # post-attention LayerNorm gamma / beta
_BF2 = 5                 # second FFN linear bias
_G2, _B2 = 6, 7          # post-FFN LayerNorm gamma / beta
_NUM_VEC_ROWS = 8        # exactly one sublane tile


# ---------------------------------------------------------------------------
# In-kernel helpers
# ---------------------------------------------------------------------------
def _layernorm(x, gamma, beta, eps=1e-5):
    mean = jnp.mean(x, axis=-1, keepdims=True)
    var = jnp.mean((x - mean) ** 2, axis=-1, keepdims=True)
    return (x - mean) * jax.lax.rsqrt(var + eps) * gamma + beta


def stage_kernel(x_ref, wr_ref, wqkv_ref, wo_ref, w1_ref, w2_ref,
                 vec_ref, bqkv_ref, bf1_ref, o_ref, *, num_heads):
    """One TDM stage (reduction + transformer encoder layer) for a batch block.

    x_ref    : [BB, T, Cin2]   downsampled features (batch block)
    wr_ref   : [Cin2, C]       reduction Linear (bias=False)      (bf16)
    wqkv_ref : [C, 3C]         fused q/k/v projection weights     (bf16)
    wo_ref   : [C, C]          attention output projection        (bf16)
    w1_ref   : [C, 4C]         FFN linear 1                       (bf16)
    w2_ref   : [4C, C]         FFN linear 2                       (bf16)
    vec_ref  : [8, C]          packed gammas / betas / biases     (f32)
    bqkv_ref : [1, 3C]         fused q/k/v bias                   (f32)
    bf1_ref  : [1, 4C]         FFN linear 1 bias                  (f32)
    o_ref    : [BB, T, C]
    """
    BB, T, Cin2 = x_ref.shape
    C = o_ref.shape[-1]
    dh = C // num_heads
    scale = 1.0 / math.sqrt(dh)

    vecs = vec_ref[...]                                   # single small load
    g_r, b_r = vecs[_GR:_GR + 1], vecs[_BR:_BR + 1]
    bo = vecs[_BO:_BO + 1]
    g1, b1 = vecs[_G1:_G1 + 1], vecs[_B1:_B1 + 1]
    bf2 = vecs[_BF2:_BF2 + 1]
    g2, b2 = vecs[_G2:_G2 + 1], vecs[_B2:_B2 + 1]

    # ---- reduction: Linear(bias=False) + LayerNorm (batch-flattened) --------
    x = x_ref[...].reshape(BB * T, Cin2).astype(wr_ref.dtype)
    h = jnp.dot(x, wr_ref[...], preferred_element_type=jnp.float32)
    h = _layernorm(h, g_r, b_r)                           # [BB*T, C] f32

    # ---- multi-head self-attention ------------------------------------------
    # Fused qkv projection: one MXU matmul instead of three.
    hc = h.astype(wqkv_ref.dtype)
    qkv = jnp.dot(hc, wqkv_ref[...],
                  preferred_element_type=jnp.float32) + bqkv_ref[...]  # [BB*T, 3C]

    # Static per-head loop; pure lane slices, no transposes / relayouts.
    heads = []
    for hd in range(num_heads):                           # bounded, small unroll
        s0 = hd * dh
        q_h = (qkv[:, s0:s0 + dh] * scale).reshape(BB, T, dh)
        k_h = qkv[:, C + s0:C + s0 + dh].reshape(BB, T, dh)
        v_h = qkv[:, 2 * C + s0:2 * C + s0 + dh].reshape(BB, T, dh)
        s = jnp.einsum('bqd,bkd->bqk', q_h, k_h,
                       preferred_element_type=jnp.float32)        # [BB, T, T]
        s = s - jnp.max(s, axis=-1, keepdims=True)
        p = jnp.exp(s)
        p = p * pl.reciprocal(jnp.sum(p, axis=-1, keepdims=True), approx=True)
        o_h = jnp.einsum('bqk,bkd->bqd', p, v_h,
                         preferred_element_type=jnp.float32)      # [BB, T, dh]
        heads.append(o_h)
    attn = jnp.concatenate(heads, axis=-1).reshape(BB * T, C)

    attn = jnp.dot(attn.astype(wo_ref.dtype), wo_ref[...],
                   preferred_element_type=jnp.float32) + bo
    src = _layernorm(h + attn, g1, b1)

    # ---- feed-forward --------------------------------------------------------
    f = jnp.dot(src.astype(w1_ref.dtype), w1_ref[...],
                preferred_element_type=jnp.float32) + bf1_ref[...]
    f = jnp.maximum(f, 0.0)                               # relu
    f = jnp.dot(f.astype(w2_ref.dtype), w2_ref[...],
                preferred_element_type=jnp.float32) + bf2
    out = _layernorm(src + f, g2, b2)

    o_ref[...] = out.reshape(BB, T, C).astype(o_ref.dtype)


# ---------------------------------------------------------------------------
# Parameter packing (fewer, denser kernel inputs; bf16 weights for the MXU)
# ---------------------------------------------------------------------------
def pack_stage_params(p, compute_dtype=jnp.bfloat16):
    C = p["wr"].shape[1]
    wr = p["wr"].astype(compute_dtype)                    # [Cin2, C]
    wqkv = p["wqkv"].astype(compute_dtype)                # [C, 3C]
    wo = p["wo"].astype(compute_dtype)                    # [C, C]
    w1 = p["w1"].astype(compute_dtype)                    # [C, 4C]
    w2 = p["w2"].astype(compute_dtype)                    # [4C, C]

    rows = [
        p["g_r"].reshape(C), p["b_r"].reshape(C),
        p["bo"].reshape(C),
        p["g1"].reshape(C), p["b1"].reshape(C),
        p["bf2"].reshape(C),
        p["g2"].reshape(C), p["b2"].reshape(C),
    ]
    vecs = jnp.stack(rows, axis=0).astype(jnp.float32)    # [8, C] (one sublane tile)
    assert vecs.shape[0] == _NUM_VEC_ROWS
    bqkv = p["bqkv"].astype(jnp.float32).reshape(1, 3 * C)
    bf1 = p["bf1"].astype(jnp.float32).reshape(1, 4 * C)
    return dict(wr=wr, wqkv=wqkv, wo=wo, w1=w1, w2=w2,
                vecs=vecs, bqkv=bqkv, bf1=bf1)


def _full_block_spec(a):
    zeros = (0,) * a.ndim
    return pl.BlockSpec(a.shape, lambda i, _z=zeros: _z)  # resident, constant index


def _pick_batch_block(B, cap=8):
    bb = min(B, cap)
    while B % bb:
        bb -= 1
    return bb


# ---------------------------------------------------------------------------
# Per-stage wrapper around pallas_call
# ---------------------------------------------------------------------------
def run_stage(x_btc, params, num_heads, *, compute_dtype=jnp.bfloat16,
              batch_block_cap=8):
    """x_btc: [B, T, 2*C_prev] -> [B, T, C]."""
    B, T, Cin2 = x_btc.shape
    C = params["wr"].shape[1]
    assert C % num_heads == 0, "num_heads must divide out_channels"

    packed = pack_stage_params(params, compute_dtype)
    weight_args = [packed[k] for k in
                   ("wr", "wqkv", "wo", "w1", "w2", "vecs", "bqkv", "bf1")]

    bb = _pick_batch_block(B, batch_block_cap)
    grid = (B // bb,)

    in_specs = [pl.BlockSpec((bb, T, Cin2), lambda i: (i, 0, 0))]
    in_specs += [_full_block_spec(a) for a in weight_args]
    out_spec = pl.BlockSpec((bb, T, C), lambda i: (i, 0, 0))

    return pl.pallas_call(
        partial(stage_kernel, num_heads=num_heads),
        out_shape=jax.ShapeDtypeStruct((B, T, C), jnp.float32),
        grid=grid,
        in_specs=in_specs,
        out_specs=out_spec,
        compiler_params=pltpu.CompilerParams(
            dimension_semantics=("parallel",),        # batch blocks independent
            vmem_limit_bytes=48 * 1024 * 1024,        # > default scoped VMEM
        ),
    )(x_btc, *weight_args)


# ---------------------------------------------------------------------------
# Glue (PE / downsample / output-order) in plain JAX, all in [B, T, C] layout
# ---------------------------------------------------------------------------
def positional_encoding(t, d):
    pos = jnp.arange(t, dtype=jnp.float32)[:, None]
    div = jnp.exp(jnp.arange(0, d, 2, dtype=jnp.float32) * (-math.log(10000.0) / d))
    pe = jnp.zeros((t, d), jnp.float32)
    pe = pe.at[:, 0::2].set(jnp.sin(pos * div))
    pe = pe.at[:, 1::2].set(jnp.cos(pos * div))
    return pe                                             # [T, d]


def downsample_btc(x, s):
    """[B,T,C] -> [B,T//s,s*C] with symmetric time padding.

    Equivalent to the torch rearrange '(t s) b c -> t b (s c)' on [T,B,C]."""
    b, t, c = x.shape
    margin = t % s
    if margin != 0:
        pad_left = (s - margin) // 2
        pad_right = s - margin - pad_left
        x = jnp.pad(x, ((0, 0), (pad_left, pad_right), (0, 0)))
        t = x.shape[1]
    return x.reshape(b, t // s, s * c)


def self_attn_tdm_forward(x_bct, params, num_heads, strides=2,
                          out_indices=(0, 1, 2, 3, 4), out_order="tbc",
                          add_pe=True, compute_dtype=jnp.bfloat16):
    x = jnp.transpose(x_bct, (0, 2, 1))                   # [B, T, C]
    _, T, C = x.shape
    if add_pe:
        # scale_pe=True; dropout = identity (eval mode)
        x = x * math.sqrt(C) + positional_encoding(T, C)[None]
    outs = []
    if 0 in out_indices:
        outs.append(x)
    for i, p in enumerate(params):
        x = downsample_btc(x, strides)
        x = run_stage(x, p, num_heads, compute_dtype=compute_dtype)   # Pallas hot path
        if i + 1 in out_indices:
            outs.append(x)
    if out_order == "tbc":
        outs = [jnp.transpose(o, (1, 0, 2)) for o in outs]            # [T,B,C]
    else:  # 'bct'
        outs = [jnp.transpose(o, (0, 2, 1)) for o in outs]            # [B,C,T]
    if len(outs) == 1:
        return outs[0]
    return tuple(outs)


# ---------------------------------------------------------------------------
# Deterministic parameter construction (synthetic weights)
# ---------------------------------------------------------------------------
def init_params(key, in_channels, out_channels, num_stages):
    params = []
    C = out_channels
    for i in range(num_stages):
        layer_in_c = in_channels * 2 if i == 0 else out_channels * 2
        ks = jax.random.split(jax.random.fold_in(key, i), 6)
        p = dict(
            wr=0.02 * jax.random.normal(ks[0], (layer_in_c, C), jnp.float32),
            g_r=jnp.ones((1, C), jnp.float32), b_r=jnp.zeros((1, C), jnp.float32),
            wqkv=0.02 * jax.random.normal(ks[1], (C, 3 * C), jnp.float32),
            bqkv=jnp.zeros((1, 3 * C), jnp.float32),
            wo=0.02 * jax.random.normal(ks[2], (C, C), jnp.float32),
            bo=jnp.zeros((1, C), jnp.float32),
            g1=jnp.ones((1, C), jnp.float32), b1=jnp.zeros((1, C), jnp.float32),
            w1=0.02 * jax.random.normal(ks[3], (C, 4 * C), jnp.float32),
            bf1=0.02 * jax.random.normal(ks[4], (1, 4 * C), jnp.float32),
            w2=0.02 * jax.random.normal(ks[5], (4 * C, C), jnp.float32),
            bf2=jnp.zeros((1, C), jnp.float32),
            g2=jnp.ones((1, C), jnp.float32), b2=jnp.zeros((1, C), jnp.float32),
        )
        params.append(p)
    return params


if __name__ == "__main__":
    # small shapes consistent with the module: x is [B, C, T]
    B, C_in, T = 2, 32, 16
    C_out, num_heads = 32, 4
    stage_layers = (1, 1, 1, 1)

    x = jax.random.normal(jax.random.PRNGKey(0), (B, C_in, T), jnp.float32)
    params = init_params(jax.random.PRNGKey(1), C_in, C_out, len(stage_layers))

    outs = self_attn_tdm_forward(x, params, num_heads=num_heads, strides=2,
                                 out_indices=(0, 1, 2, 3, 4), out_order="tbc",
                                 add_pe=True)
    outs = jax.block_until_ready(outs)
    # sanity: 5 outputs, shapes [16,2,32], [8,2,32], [4,2,32], [2,2,32], [1,2,32]
    assert len(outs) == 5
    assert outs[0].shape == (T, B, C_in)
    assert outs[1].shape == (T // 2, B, C_out)
    assert outs[4].shape == (T // 16, B, C_out)
    assert all(bool(jnp.all(jnp.isfinite(o))) for o in outs)
    print("KERNEL_OK")
</pallas_src>

<mosaic_0001>
module attributes {stable_mosaic.version = 11 : i64} {
  func.func @stage_kernel(%arg0: i32, %arg1: memref<2x8x64xf32, #tpu.memory_space<vmem>>, %arg2: memref<64x32xbf16, #tpu.memory_space<vmem>>, %arg3: memref<32x96xbf16, #tpu.memory_space<vmem>>, %arg4: memref<32x32xbf16, #tpu.memory_space<vmem>>, %arg5: memref<32x128xbf16, #tpu.memory_space<vmem>>, %arg6: memref<128x32xbf16, #tpu.memory_space<vmem>>, %arg7: memref<8x32xf32, #tpu.memory_space<vmem>>, %arg8: memref<1x96xf32, #tpu.memory_space<vmem>>, %arg9: memref<1x128xf32, #tpu.memory_space<vmem>>, %arg10: memref<2x8x32xf32, #tpu.memory_space<vmem>>) attributes {dimension_semantics = [#tpu.dimension_semantics<parallel>], iteration_bounds = array<i64: 1>, scalar_prefetch = 0 : i64, scratch_operands = 0 : i64, tpu.core_type = #tpu.core_type<tc>, window_params = [{transform_indices = @transform_0, window_bounds = array<i64: 2, 8, 64>}, {pipeline_mode = #tpu.pipeline_mode<synchronous>, transform_indices = @transform_1, window_bounds = array<i64: 64, 32>}, {pipeline_mode = #tpu.pipeline_mode<synchronous>, transform_indices = @transform_2, window_bounds = array<i64: 32, 96>}, {pipeline_mode = #tpu.pipeline_mode<synchronous>, transform_indices = @transform_3, window_bounds = array<i64: 32, 32>}, {pipeline_mode = #tpu.pipeline_mode<synchronous>, transform_indices = @transform_4, window_bounds = array<i64: 32, 128>}, {pipeline_mode = #tpu.pipeline_mode<synchronous>, transform_indices = @transform_5, window_bounds = array<i64: 128, 32>}, {pipeline_mode = #tpu.pipeline_mode<synchronous>, transform_indices = @transform_6, window_bounds = array<i64: 8, 32>}, {pipeline_mode = #tpu.pipeline_mode<synchronous>, transform_indices = @transform_7, window_bounds = array<i64: 1, 96>}, {pipeline_mode = #tpu.pipeline_mode<synchronous>, transform_indices = @transform_8, window_bounds = array<i64: 1, 128>}, {transform_indices = @transform_9, window_bounds = array<i64: 2, 8, 32>}]} {
    %c0 = arith.constant 0 : index
    %c0_0 = arith.constant 0 : index
    %0 = vector.load %arg7[%c0, %c0_0] : memref<8x32xf32, #tpu.memory_space<vmem>>, vector<8x32xf32>
    %1 = vector.extract_strided_slice %0 {offsets = [0, 0], sizes = [1, 32], strides = [1, 1]} : vector<8x32xf32> to vector<1x32xf32>
    %2 = vector.extract_strided_slice %0 {offsets = [1, 0], sizes = [1, 32], strides = [1, 1]} : vector<8x32xf32> to vector<1x32xf32>
    %3 = vector.extract_strided_slice %0 {offsets = [2, 0], sizes = [1, 32], strides = [1, 1]} : vector<8x32xf32> to vector<1x32xf32>
    %4 = vector.extract_strided_slice %0 {offsets = [3, 0], sizes = [1, 32], strides = [1, 1]} : vector<8x32xf32> to vector<1x32xf32>
    %5 = vector.extract_strided_slice %0 {offsets = [4, 0], sizes = [1, 32], strides = [1, 1]} : vector<8x32xf32> to vector<1x32xf32>
    %6 = vector.extract_strided_slice %0 {offsets = [5, 0], sizes = [1, 32], strides = [1, 1]} : vector<8x32xf32> to vector<1x32xf32>
    %7 = vector.extract_strided_slice %0 {offsets = [6, 0], sizes = [1, 32], strides = [1, 1]} : vector<8x32xf32> to vector<1x32xf32>
    %8 = vector.extract_strided_slice %0 {offsets = [7, 0], sizes = [1, 32], strides = [1, 1]} : vector<8x32xf32> to vector<1x32xf32>
    %c0_1 = arith.constant 0 : index
    %c0_2 = arith.constant 0 : index
    %c0_3 = arith.constant 0 : index
    %9 = vector.load %arg1[%c0_1, %c0_2, %c0_3] : memref<2x8x64xf32, #tpu.memory_space<vmem>>, vector<2x8x64xf32>
    %10 = vector.shape_cast %9 : vector<2x8x64xf32> to vector<16x64xf32>
    %11 = arith.truncf %10 : vector<16x64xf32> to vector<16x64xbf16>
    %c0_4 = arith.constant 0 : index
    %c0_5 = arith.constant 0 : index
    %12 = vector.load %arg2[%c0_4, %c0_5] : memref<64x32xbf16, #tpu.memory_space<vmem>>, vector<64x32xbf16>
    %cst = arith.constant dense<0.000000e+00> : vector<16x32xf32>
    %13 = tpu.matmul %11, %12, %cst {dimension_numbers = #tpu.dot_dimension_numbers<[1], [0], [0], [1], [0, 0, 1, 1], [], []>} : vector<16x64xbf16>, vector<64x32xbf16>, vector<16x32xf32> -> vector<16x32xf32>
    %cst_6 = arith.constant dense<0.000000e+00> : vector<16xf32>
    %14 = vector.multi_reduction <add>, %13, %cst_6 [1] : vector<16x32xf32> to vector<16xf32>
    %15 = vector.shape_cast %14 : vector<16xf32> to vector<16x1xf32>
    %cst_7 = arith.constant 3.200000e+01 : f32
    %16 = vector.broadcast %cst_7 : f32 to vector<16x1xf32>
    %17 = arith.divf %15, %16 : vector<16x1xf32>
    %18 = vector.broadcast %17 : vector<16x1xf32> to vector<16x32xf32>
    %19 = arith.subf %13, %18 : vector<16x32xf32>
    %20 = arith.mulf %19, %19 : vector<16x32xf32>
    %cst_8 = arith.constant dense<0.000000e+00> : vector<16xf32>
    %21 = vector.multi_reduction <add>, %20, %cst_8 [1] : vector<16x32xf32> to vector<16xf32>
    %22 = vector.shape_cast %21 : vector<16xf32> to vector<16x1xf32>
    %cst_9 = arith.constant 3.200000e+01 : f32
    %23 = vector.broadcast %cst_9 : f32 to vector<16x1xf32>
    %24 = arith.divf %22, %23 : vector<16x1xf32>
    %25 = vector.broadcast %17 : vector<16x1xf32> to vector<16x32xf32>
    %26 = arith.subf %13, %25 : vector<16x32xf32>
    %cst_10 = arith.constant 9.99999974E-6 : f32
    %27 = vector.broadcast %cst_10 : f32 to vector<16x1xf32>
    %28 = arith.addf %24, %27 : vector<16x1xf32>
    %29 = math.rsqrt %28 : vector<16x1xf32>
    %30 = vector.broadcast %29 : vector<16x1xf32> to vector<16x32xf32>
    %31 = arith.mulf %26, %30 : vector<16x32xf32>
    %32 = vector.broadcast %1 : vector<1x32xf32> to vector<16x32xf32>
    %33 = arith.mulf %31, %32 : vector<16x32xf32>
    %34 = vector.broadcast %2 : vector<1x32xf32> to vector<16x32xf32>
    %35 = arith.addf %33, %34 : vector<16x32xf32>
    %36 = arith.truncf %35 : vector<16x32xf32> to vector<16x32xbf16>
    %c0_11 = arith.constant 0 : index
    %c0_12 = arith.constant 0 : index
    %37 = vector.load %arg3[%c0_11, %c0_12] : memref<32x96xbf16, #tpu.memory_space<vmem>>, vector<32x96xbf16>
    %cst_13 = arith.constant dense<0.000000e+00> : vector<16x96xf32>
    %38 = tpu.matmul %36, %37, %cst_13 {dimension_numbers = #tpu.dot_dimension_numbers<[1], [0], [0], [1], [0, 0, 1, 1], [], []>} : vector<16x32xbf16>, vector<32x96xbf16>, vector<16x96xf32> -> vector<16x96xf32>
    %c0_14 = arith.constant 0 : index
    %c0_15 = arith.constant 0 : index
    %39 = vector.load %arg8[%c0_14, %c0_15] : memref<1x96xf32, #tpu.memory_space<vmem>>, vector<1x96xf32>
    %40 = vector.broadcast %39 : vector<1x96xf32> to vector<16x96xf32>
    %41 = arith.addf %38, %40 : vector<16x96xf32>
    %42 = vector.extract_strided_slice %41 {offsets = [0, 0], sizes = [16, 8], strides = [1, 1]} : vector<16x96xf32> to vector<16x8xf32>
    %cst_16 = arith.constant 0.353553385 : f32
    %43 = vector.broadcast %cst_16 : f32 to vector<16x8xf32>
    %44 = arith.mulf %42, %43 : vector<16x8xf32>
    %45 = vector.shape_cast %44 : vector<16x8xf32> to vector<2x8x8xf32>
    %46 = vector.extract_strided_slice %41 {offsets = [0, 32], sizes = [16, 8], strides = [1, 1]} : vector<16x96xf32> to vector<16x8xf32>
    %47 = vector.shape_cast %46 : vector<16x8xf32> to vector<2x8x8xf32>
    %48 = vector.extract_strided_slice %41 {offsets = [0, 64], sizes = [16, 8], strides = [1, 1]} : vector<16x96xf32> to vector<16x8xf32>
    %49 = vector.shape_cast %48 : vector<16x8xf32> to vector<2x8x8xf32>
    "tpu.trace_start"() <{level = 10 : i32, message = "bqd,bkd->bqk"}> : () -> ()
    %cst_17 = arith.constant dense<0.000000e+00> : vector<2x8x8xf32>
    %50 = tpu.matmul %45, %47, %cst_17 {dimension_numbers = #tpu.dot_dimension_numbers<[2], [2], [1], [1], [0, 0, 0, 1, 1, 1], [0], [0]>} : vector<2x8x8xf32>, vector<2x8x8xf32>, vector<2x8x8xf32> -> vector<2x8x8xf32>
    "tpu.trace_stop"() : () -> ()
    %cst_18 = arith.constant dense<0xFF800000> : vector<2x8xf32>
    %51 = vector.multi_reduction <maximumf>, %50, %cst_18 [2] : vector<2x8x8xf32> to vector<2x8xf32>
    %52 = vector.shape_cast %51 : vector<2x8xf32> to vector<2x8x1xf32>
    %53 = vector.broadcast %52 : vector<2x8x1xf32> to vector<2x8x8xf32>
    %54 = arith.subf %50, %53 : vector<2x8x8xf32>
    %55 = math.exp %54 : vector<2x8x8xf32>
    %cst_19 = arith.constant dense<0.000000e+00> : vector<2x8xf32>
    %56 = vector.multi_reduction <add>, %55, %cst_19 [2] : vector<2x8x8xf32> to vector<2x8xf32>
    %57 = vector.shape_cast %56 : vector<2x8xf32> to vector<2x8x1xf32>
    %58 = tpu.reciprocal %57 {approx = true} : vector<2x8x1xf32> -> vector<2x8x1xf32>
    %59 = vector.broadcast %58 : vector<2x8x1xf32> to vector<2x8x8xf32>
    %60 = arith.mulf %55, %59 : vector<2x8x8xf32>
    "tpu.trace_start"() <{level = 10 : i32, message = "bqk,bkd->bqd"}> : () -> ()
    %cst_20 = arith.constant dense<0.000000e+00> : vector<2x8x8xf32>
    %61 = tpu.matmul %60, %49, %cst_20 {dimension_numbers = #tpu.dot_dimension_numbers<[2], [1], [1], [2], [0, 0, 0, 1, 1, 2], [0], [0]>} : vector<2x8x8xf32>, vector<2x8x8xf32>, vector<2x8x8xf32> -> vector<2x8x8xf32>
    "tpu.trace_stop"() : () -> ()
    %62 = vector.extract_strided_slice %41 {offsets = [0, 8], sizes = [16, 8], strides = [1, 1]} : vector<16x96xf32> to vector<16x8xf32>
    %cst_21 = arith.constant 0.353553385 : f32
    %63 = vector.broadcast %cst_21 : f32 to vector<16x8xf32>
    %64 = arith.mulf %62, %63 : vector<16x8xf32>
    %65 = vector.shape_cast %64 : vector<16x8xf32> to vector<2x8x8xf32>
    %66 = vector.extract_strided_slice %41 {offsets = [0, 40], sizes = [16, 8], strides = [1, 1]} : vector<16x96xf32> to vector<16x8xf32>
    %67 = vector.shape_cast %66 : vector<16x8xf32> to vector<2x8x8xf32>
    %68 = vector.extract_strided_slice %41 {offsets = [0, 72], sizes = [16, 8], strides = [1, 1]} : vector<16x96xf32> to vector<16x8xf32>
    %69 = vector.shape_cast %68 : vector<16x8xf32> to vector<2x8x8xf32>
    "tpu.trace_start"() <{level = 10 : i32, message = "bqd,bkd->bqk"}> : () -> ()
    %cst_22 = arith.constant dense<0.000000e+00> : vector<2x8x8xf32>
    %70 = tpu.matmul %65, %67, %cst_22 {dimension_numbers = #tpu.dot_dimension_numbers<[2], [2], [1], [1], [0, 0, 0, 1, 1, 1], [0], [0]>} : vector<2x8x8xf32>, vector<2x8x8xf32>, vector<2x8x8xf32> -> vector<2x8x8xf32>
    "tpu.trace_stop"() : () -> ()
    %cst_23 = arith.constant dense<0xFF800000> : vector<2x8xf32>
    %71 = vector.multi_reduction <maximumf>, %70, %cst_23 [2] : vector<2x8x8xf32> to vector<2x8xf32>
    %72 = vector.shape_cast %71 : vector<2x8xf32> to vector<2x8x1xf32>
    %73 = vector.broadcast %72 : vector<2x8x1xf32> to vector<2x8x8xf32>
    %74 = arith.subf %70, %73 : vector<2x8x8xf32>
    %75 = math.exp %74 : vector<2x8x8xf32>
    %cst_24 = arith.constant dense<0.000000e+00> : vector<2x8xf32>
    %76 = vector.multi_reduction <add>, %75, %cst_24 [2] : vector<2x8x8xf32> to vector<2x8xf32>
    %77 = vector.shape_cast %76 : vector<2x8xf32> to vector<2x8x1xf32>
    %78 = tpu.reciprocal %77 {approx = true} : vector<2x8x1xf32> -> vector<2x8x1xf32>
    %79 = vector.broadcast %78 : vector<2x8x1xf32> to vector<2x8x8xf32>
    %80 = arith.mulf %75, %79 : vector<2x8x8xf32>
    "tpu.trace_start"() <{level = 10 : i32, message = "bqk,bkd->bqd"}> : () -> ()
    %cst_25 = arith.constant dense<0.000000e+00> : vector<2x8x8xf32>
    %81 = tpu.matmul %80, %69, %cst_25 {dimension_numbers = #tpu.dot_dimension_numbers<[2], [1], [1], [2], [0, 0, 0, 1, 1, 2], [0], [0]>} : vector<2x8x8xf32>, vector<2x8x8xf32>, vector<2x8x8xf32> -> vector<2x8x8xf32>
    "tpu.trace_stop"() : () -> ()
    %82 = vector.extract_strided_slice %41 {offsets = [0, 16], sizes = [16, 8], strides = [1, 1]} : vector<16x96xf32> to vector<16x8xf32>
    %cst_26 = arith.constant 0.353553385 : f32
    %83 = vector.broadcast %cst_26 : f32 to vector<16x8xf32>
    %84 = arith.mulf %82, %83 : vector<16x8xf32>
    %85 = vector.shape_cast %84 : vector<16x8xf32> to vector<2x8x8xf32>
    %86 = vector.extract_strided_slice %41 {offsets = [0, 48], sizes = [16, 8], strides = [1, 1]} : vector<16x96xf32> to vector<16x8xf32>
    %87 = vector.shape_cast %86 : vector<16x8xf32> to vector<2x8x8xf32>
    %88 = vector.extract_strided_slice %41 {offsets = [0, 80], sizes = [16, 8], strides = [1, 1]} : vector<16x96xf32> to vector<16x8xf32>
    %89 = vector.shape_cast %88 : vector<16x8xf32> to vector<2x8x8xf32>
    "tpu.trace_start"() <{level = 10 : i32, message = "bqd,bkd->bqk"}> : () -> ()
    %cst_27 = arith.constant dense<0.000000e+00> : vector<2x8x8xf32>
    %90 = tpu.matmul %85, %87, %cst_27 {dimension_numbers = #tpu.dot_dimension_numbers<[2], [2], [1], [1], [0, 0, 0, 1, 1, 1], [0], [0]>} : vector<2x8x8xf32>, vector<2x8x8xf32>, vector<2x8x8xf32> -> vector<2x8x8xf32>
    "tpu.trace_stop"() : () -> ()
    %cst_28 = arith.constant dense<0xFF800000> : vector<2x8xf32>
    %91 = vector.multi_reduction <maximumf>, %90, %cst_28 [2] : vector<2x8x8xf32> to vector<2x8xf32>
    %92 = vector.shape_cast %91 : vector<2x8xf32> to vector<2x8x1xf32>
    %93 = vector.broadcast %92 : vector<2x8x1xf32> to vector<2x8x8xf32>
    %94 = arith.subf %90, %93 : vector<2x8x8xf32>
    %95 = math.exp %94 : vector<2x8x8xf32>
    %cst_29 = arith.constant dense<0.000000e+00> : vector<2x8xf32>
    %96 = vector.multi_reduction <add>, %95, %cst_29 [2] : vector<2x8x8xf32> to vector<2x8xf32>
    %97 = vector.shape_cast %96 : vector<2x8xf32> to vector<2x8x1xf32>
    %98 = tpu.reciprocal %97 {approx = true} : vector<2x8x1xf32> -> vector<2x8x1xf32>
    %99 = vector.broadcast %98 : vector<2x8x1xf32> to vector<2x8x8xf32>
    %100 = arith.mulf %95, %99 : vector<2x8x8xf32>
    "tpu.trace_start"() <{level = 10 : i32, message = "bqk,bkd->bqd"}> : () -> ()
    %cst_30 = arith.constant dense<0.000000e+00> : vector<2x8x8xf32>
    %101 = tpu.matmul %100, %89, %cst_30 {dimension_numbers = #tpu.dot_dimension_numbers<[2], [1], [1], [2], [0, 0, 0, 1, 1, 2], [0], [0]>} : vector<2x8x8xf32>, vector<2x8x8xf32>, vector<2x8x8xf32> -> vector<2x8x8xf32>
    "tpu.trace_stop"() : () -> ()
    %102 = vector.extract_strided_slice %41 {offsets = [0, 24], sizes = [16, 8], strides = [1, 1]} : vector<16x96xf32> to vector<16x8xf32>
    %cst_31 = arith.constant 0.353553385 : f32
    %103 = vector.broadcast %cst_31 : f32 to vector<16x8xf32>
    %104 = arith.mulf %102, %103 : vector<16x8xf32>
    %105 = vector.shape_cast %104 : vector<16x8xf32> to vector<2x8x8xf32>
    %106 = vector.extract_strided_slice %41 {offsets = [0, 56], sizes = [16, 8], strides = [1, 1]} : vector<16x96xf32> to vector<16x8xf32>
    %107 = vector.shape_cast %106 : vector<16x8xf32> to vector<2x8x8xf32>
    %108 = vector.extract_strided_slice %41 {offsets = [0, 88], sizes = [16, 8], strides = [1, 1]} : vector<16x96xf32> to vector<16x8xf32>
    %109 = vector.shape_cast %108 : vector<16x8xf32> to vector<2x8x8xf32>
    "tpu.trace_start"() <{level = 10 : i32, message = "bqd,bkd->bqk"}> : () -> ()
    %cst_32 = arith.constant dense<0.000000e+00> : vector<2x8x8xf32>
    %110 = tpu.matmul %105, %107, %cst_32 {dimension_numbers = #tpu.dot_dimension_numbers<[2], [2], [1], [1], [0, 0, 0, 1, 1, 1], [0], [0]>} : vector<2x8x8xf32>, vector<2x8x8xf32>, vector<2x8x8xf32> -> vector<2x8x8xf32>
    "tpu.trace_stop"() : () -> ()
    %cst_33 = arith.constant dense<0xFF800000> : vector<2x8xf32>
    %111 = vector.multi_reduction <maximumf>, %110, %cst_33 [2] : vector<2x8x8xf32> to vector<2x8xf32>
    %112 = vector.shape_cast %111 : vector<2x8xf32> to vector<2x8x1xf32>
    %113 = vector.broadcast %112 : vector<2x8x1xf32> to vector<2x8x8xf32>
    %114 = arith.subf %110, %113 : vector<2x8x8xf32>
    %115 = math.exp %114 : vector<2x8x8xf32>
    %cst_34 = arith.constant dense<0.000000e+00> : vector<2x8xf32>
    %116 = vector.multi_reduction <add>, %115, %cst_34 [2] : vector<2x8x8xf32> to vector<2x8xf32>
    %117 = vector.shape_cast %116 : vector<2x8xf32> to vector<2x8x1xf32>
    %118 = tpu.reciprocal %117 {approx = true} : vector<2x8x1xf32> -> vector<2x8x1xf32>
    %119 = vector.broadcast %118 : vector<2x8x1xf32> to vector<2x8x8xf32>
    %120 = arith.mulf %115, %119 : vector<2x8x8xf32>
    "tpu.trace_start"() <{level = 10 : i32, message = "bqk,bkd->bqd"}> : () -> ()
    %cst_35 = arith.constant dense<0.000000e+00> : vector<2x8x8xf32>
    %121 = tpu.matmul %120, %109, %cst_35 {dimension_numbers = #tpu.dot_dimension_numbers<[2], [1], [1], [2], [0, 0, 0, 1, 1, 2], [0], [0]>} : vector<2x8x8xf32>, vector<2x8x8xf32>, vector<2x8x8xf32> -> vector<2x8x8xf32>
    "tpu.trace_stop"() : () -> ()
    %122 = tpu.concatenate %61, %81, %101, %121 in 2 : vector<2x8x8xf32>, vector<2x8x8xf32>, vector<2x8x8xf32>, vector<2x8x8xf32> -> vector<2x8x32xf32>
    %123 = vector.shape_cast %122 : vector<2x8x32xf32> to vector<16x32xf32>
    %124 = arith.truncf %123 : vector<16x32xf32> to vector<16x32xbf16>
    %c0_36 = arith.constant 0 : index
    %c0_37 = arith.constant 0 : index
    %125 = vector.load %arg4[%c0_36, %c0_37] : memref<32x32xbf16, #tpu.memory_space<vmem>>, vector<32x32xbf16>
    %cst_38 = arith.constant dense<0.000000e+00> : vector<16x32xf32>
    %126 = tpu.matmul %124, %125, %cst_38 {dimension_numbers = #tpu.dot_dimension_numbers<[1], [0], [0], [1], [0, 0, 1, 1], [], []>} : vector<16x32xbf16>, vector<32x32xbf16>, vector<16x32xf32> -> vector<16x32xf32>
    %127 = vector.broadcast %3 : vector<1x32xf32> to vector<16x32xf32>
    %128 = arith.addf %126, %127 : vector<16x32xf32>
    %129 = arith.addf %35, %128 : vector<16x32xf32>
    %cst_39 = arith.constant dense<0.000000e+00> : vector<16xf32>
    %130 = vector.multi_reduction <add>, %129, %cst_39 [1] : vector<16x32xf32> to vector<16xf32>
    %131 = vector.shape_cast %130 : vector<16xf32> to vector<16x1xf32>
    %cst_40 = arith.constant 3.200000e+01 : f32
    %132 = vector.broadcast %cst_40 : f32 to vector<16x1xf32>
    %133 = arith.divf %131, %132 : vector<16x1xf32>
    %134 = vector.broadcast %133 : vector<16x1xf32> to vector<16x32xf32>
    %135 = arith.subf %129, %134 : vector<16x32xf32>
    %136 = arith.mulf %135, %135 : vector<16x32xf32>
    %cst_41 = arith.constant dense<0.000000e+00> : vector<16xf32>
    %137 = vector.multi_reduction <add>, %136, %cst_41 [1] : vector<16x32xf32> to vector<16xf32>
    %138 = vector.shape_cast %137 : vector<16xf32> to vector<16x1xf32>
    %cst_42 = arith.constant 3.200000e+01 : f32
    %139 = vector.broadcast %cst_42 : f32 to vector<16x1xf32>
    %140 = arith.divf %138, %139 : vector<16x1xf32>
    %141 = vector.broadcast %133 : vector<16x1xf32> to vector<16x32xf32>
    %142 = arith.subf %129, %141 : vector<16x32xf32>
    %cst_43 = arith.constant 9.99999974E-6 : f32
    %143 = vector.broadcast %cst_43 : f32 to vector<16x1xf32>
    %144 = arith.addf %140, %143 : vector<16x1xf32>
    %145 = math.rsqrt %144 : vector<16x1xf32>
    %146 = vector.broadcast %145 : vector<16x1xf32> to vector<16x32xf32>
    %147 = arith.mulf %142, %146 : vector<16x32xf32>
    %148 = vector.broadcast %4 : vector<1x32xf32> to vector<16x32xf32>
    %149 = arith.mulf %147, %148 : vector<16x32xf32>
    %150 = vector.broadcast %5 : vector<1x32xf32> to vector<16x32xf32>
    %151 = arith.addf %149, %150 : vector<16x32xf32>
    %152 = arith.truncf %151 : vector<16x32xf32> to vector<16x32xbf16>
    %c0_44 = arith.constant 0 : index
    %c0_45 = arith.constant 0 : index
    %153 = vector.load %arg5[%c0_44, %c0_45] : memref<32x128xbf16, #tpu.memory_space<vmem>>, vector<32x128xbf16>
    %cst_46 = arith.constant dense<0.000000e+00> : vector<16x128xf32>
    %154 = tpu.matmul %152, %153, %cst_46 {dimension_numbers = #tpu.dot_dimension_numbers<[1], [0], [0], [1], [0, 0, 1, 1], [], []>} : vector<16x32xbf16>, vector<32x128xbf16>, vector<16x128xf32> -> vector<16x128xf32>
    %c0_47 = arith.constant 0 : index
    %c0_48 = arith.constant 0 : index
    %155 = vector.load %arg9[%c0_47, %c0_48] : memref<1x128xf32, #tpu.memory_space<vmem>>, vector<1x128xf32>
    %156 = vector.broadcast %155 : vector<1x128xf32> to vector<16x128xf32>
    %157 = arith.addf %154, %156 : vector<16x128xf32>
    %cst_49 = arith.constant 0.000000e+00 : f32
    %158 = vector.broadcast %cst_49 : f32 to vector<16x128xf32>
    %159 = arith.maximumf %157, %158 : vector<16x128xf32>
    %160 = arith.truncf %159 : vector<16x128xf32> to vector<16x128xbf16>
    %c0_50 = arith.constant 0 : index
    %c0_51 = arith.constant 0 : index
    %161 = vector.load %arg6[%c0_50, %c0_51] : memref<128x32xbf16, #tpu.memory_space<vmem>>, vector<128x32xbf16>
    %cst_52 = arith.constant dense<0.000000e+00> : vector<16x32xf32>
    %162 = tpu.matmul %160, %161, %cst_52 {dimension_numbers = #tpu.dot_dimension_numbers<[1], [0], [0], [1], [0, 0, 1, 1], [], []>} : vector<16x128xbf16>, vector<128x32xbf16>, vector<16x32xf32> -> vector<16x32xf32>
    %163 = vector.broadcast %6 : vector<1x32xf32> to vector<16x32xf32>
    %164 = arith.addf %162, %163 : vector<16x32xf32>
    %165 = arith.addf %151, %164 : vector<16x32xf32>
    %cst_53 = arith.constant dense<0.000000e+00> : vector<16xf32>
    %166 = vector.multi_reduction <add>, %165, %cst_53 [1] : vector<16x32xf32> to vector<16xf32>
    %167 = vector.shape_cast %166 : vector<16xf32> to vector<16x1xf32>
    %cst_54 = arith.constant 3.200000e+01 : f32
    %168 = vector.broadcast %cst_54 : f32 to vector<16x1xf32>
    %169 = arith.divf %167, %168 : vector<16x1xf32>
    %170 = vector.broadcast %169 : vector<16x1xf32> to vector<16x32xf32>
    %171 = arith.subf %165, %170 : vector<16x32xf32>
    %172 = arith.mulf %171, %171 : vector<16x32xf32>
    %cst_55 = arith.constant dense<0.000000e+00> : vector<16xf32>
    %173 = vector.multi_reduction <add>, %172, %cst_55 [1] : vector<16x32xf32> to vector<16xf32>
    %174 = vector.shape_cast %173 : vector<16xf32> to vector<16x1xf32>
    %cst_56 = arith.constant 3.200000e+01 : f32
    %175 = vector.broadcast %cst_56 : f32 to vector<16x1xf32>
    %176 = arith.divf %174, %175 : vector<16x1xf32>
    %177 = vector.broadcast %169 : vector<16x1xf32> to vector<16x32xf32>
    %178 = arith.subf %165, %177 : vector<16x32xf32>
    %cst_57 = arith.constant 9.99999974E-6 : f32
    %179 = vector.broadcast %cst_57 : f32 to vector<16x1xf32>
    %180 = arith.addf %176, %179 : vector<16x1xf32>
    %181 = math.rsqrt %180 : vector<16x1xf32>
    %182 = vector.broadcast %181 : vector<16x1xf32> to vector<16x32xf32>
    %183 = arith.mulf %178, %182 : vector<16x32xf32>
    %184 = vector.broadcast %7 : vector<1x32xf32> to vector<16x32xf32>
    %185 = arith.mulf %183, %184 : vector<16x32xf32>
    %186 = vector.broadcast %8 : vector<1x32xf32> to vector<16x32xf32>
    %187 = arith.addf %185, %186 : vector<16x32xf32>
    %188 = vector.shape_cast %187 : vector<16x32xf32> to vector<2x8x32xf32>
    %c0_58 = arith.constant 0 : index
    %c0_59 = arith.constant 0 : index
    %c0_60 = arith.constant 0 : index
    %189 = vector.load %arg10[%c0_58, %c0_59, %c0_60] : memref<2x8x32xf32, #tpu.memory_space<vmem>>, vector<2x8x32xf32>
    tpu.vector_store %arg10[%c0_58, %c0_59, %c0_60], %188 {strides = array<i32>} : memref<2x8x32xf32, #tpu.memory_space<vmem>>, vector<2x8x32xf32>,
    return
  }
  func.func @transform_0(%arg0: i32) -> (i32, i32, i32) {
    %c0_i32 = arith.constant 0 : i32
    %c0_i32_0 = arith.constant 0 : i32
    %c0_i32_1 = arith.constant 0 : i32
    return %arg0, %c0_i32, %c0_i32_0 : i32, i32, i32
  }
  func.func @transform_1(%arg0: i32) -> (i32, i32) {
    %c0_i32 = arith.constant 0 : i32
    %c0_i32_0 = arith.constant 0 : i32
    %c0_i32_1 = arith.constant 0 : i32
    return %c0_i32, %c0_i32_0 : i32, i32
  }
  func.func @transform_2(%arg0: i32) -> (i32, i32) {
    %c0_i32 = arith.constant 0 : i32
    %c0_i32_0 = arith.constant 0 : i32
    %c0_i32_1 = arith.constant 0 : i32
    return %c0_i32, %c0_i32_0 : i32, i32
  }
  func.func @transform_3(%arg0: i32) -> (i32, i32) {
    %c0_i32 = arith.constant 0 : i32
    %c0_i32_0 = arith.constant 0 : i32
    %c0_i32_1 = arith.constant 0 : i32
    return %c0_i32, %c0_i32_0 : i32, i32
  }
  func.func @transform_4(%arg0: i32) -> (i32, i32) {
    %c0_i32 = arith.constant 0 : i32
    %c0_i32_0 = arith.constant 0 : i32
    %c0_i32_1 = arith.constant 0 : i32
    return %c0_i32, %c0_i32_0 : i32, i32
  }
  func.func @transform_5(%arg0: i32) -> (i32, i32) {
    %c0_i32 = arith.constant 0 : i32
    %c0_i32_0 = arith.constant 0 : i32
    %c0_i32_1 = arith.constant 0 : i32
    return %c0_i32, %c0_i32_0 : i32, i32
  }
  func.func @transform_6(%arg0: i32) -> (i32, i32) {
    %c0_i32 = arith.constant 0 : i32
    %c0_i32_0 = arith.constant 0 : i32
    %c0_i32_1 = arith.constant 0 : i32
    return %c0_i32, %c0_i32_0 : i32, i32
  }
  func.func @transform_7(%arg0: i32) -> (i32, i32) {
    %c0_i32 = arith.constant 0 : i32
    %c0_i32_0 = arith.constant 0 : i32
    %c0_i32_1 = arith.constant 0 : i32
    return %c0_i32, %c0_i32_0 : i32, i32
  }
  func.func @transform_8(%arg0: i32) -> (i32, i32) {
    %c0_i32 = arith.constant 0 : i32
    %c0_i32_0 = arith.constant 0 : i32
    %c0_i32_1 = arith.constant 0 : i32
    return %c0_i32, %c0_i32_0 : i32, i32
  }
  func.func @transform_9(%arg0: i32) -> (i32, i32, i32) {
    %c0_i32 = arith.constant 0 : i32
    %c0_i32_0 = arith.constant 0 : i32
    %c0_i32_1 = arith.constant 0 : i32
    return %arg0, %c0_i32, %c0_i32_0 : i32, i32, i32
  }
}

</mosaic_0001>

<llo_original>
// kernel: tpu_custom_call.1
$region0: #{tpu_custom_call.1}
  #allocation0 [shape = 'u32[]', space=smem, size = 0x4, offset = 0x4, fixed_abs, tag = 'smem constant byte address 0x4 - core index']
  #allocation1 [shape = 'u32[144,128]{1,0:T(1,128)}', space=vmem, size = 0x12000, scoped, tag = 'internal scratch']
  %s0 = inlined_call_operand.vmem [shape: f32[2,8,64], index: 0, kind: input, shape index: {}]
  %s1 = inlined_call_operand.vmem [shape: bf16[64,32], index: 1, kind: input, shape index: {}]
  %s2 = inlined_call_operand.vmem [shape: bf16[32,96], index: 2, kind: input, shape index: {}]
  %s3 = inlined_call_operand.vmem [shape: bf16[32,32], index: 3, kind: input, shape index: {}]
  %s4 = inlined_call_operand.vmem [shape: bf16[32,128], index: 4, kind: input, shape index: {}]
  %s5 = inlined_call_operand.vmem [shape: bf16[128,32], index: 5, kind: input, shape index: {}]
  %s6 = inlined_call_operand.vmem [shape: f32[8,32], index: 6, kind: input, shape index: {}]
  %s7 = inlined_call_operand.vmem [shape: f32[1,96], index: 7, kind: input, shape index: {}]
  %s8 = inlined_call_operand.vmem [shape: f32[1,128], index: 8, kind: input, shape index: {}]
  %s9 = inlined_call_operand.hbm [shape: f32[2,8,32], index: 9, kind: output, shape index: {}]
  %s10 = sld [smem:[#allocation0]]
  $region46: #{tpu_custom_call.1} parent=0
    _
  %s12 = ssub.s32 1, %s10
  %s13 = scalar_select 0, %s12, %s10
  $region1: #{tpu_custom_call.1} parent=0
    #allocation2 [shape = 'u8[8192]{0}', space=vmem, size = 0x2000, scoped, tag = 'output window, operand 0, single buffered']
    #allocation3 [shape = 's32[1]{0}', space=sflag, size = 0x4, scoped, tag = 'scoped memory for tpu_custom_call.1']
    %14 = vsyncpa [#allocation3], 0
    // Predicated region
    $region2: #{tpu_custom_call.1} parent=1 // pred_check
      _
    $region3: #{tpu_custom_call.1} parent=1 // pred_check_branch
      %16 = sbr.rel (0) target = $region5
    $region4: #{tpu_custom_call.1} parent=1 // pred_region
      _
    $region5: #{tpu_custom_call.1} parent=1 // pred_fallthru
      _
    // Predicated region
    $region6: #{tpu_custom_call.1} parent=1 // pred_check
      _
    $region7: #{tpu_custom_call.1} parent=1 // pred_check_branch
      %18 = sbr.rel (0) target = $region9
    $region8: #{tpu_custom_call.1} parent=1 // pred_region
      _
    $region9: #{tpu_custom_call.1} parent=1 // pred_fallthru
      _
    // Predicated region
    $region10: #{tpu_custom_call.1} parent=1 // pred_check
      _
    $region11: #{tpu_custom_call.1} parent=1 // pred_check_branch
      %20 = sbr.rel (0) target = $region13
    $region12: #{tpu_custom_call.1} parent=1 // pred_region
      _
    $region13: #{tpu_custom_call.1} parent=1 // pred_fallthru
      _
    // Predicated region
    $region14: #{tpu_custom_call.1} parent=1 // pred_check
      _
    $region15: #{tpu_custom_call.1} parent=1 // pred_check_branch
      %22 = sbr.rel (0) target = $region17
    $region16: #{tpu_custom_call.1} parent=1 // pred_region
      _
    $region17: #{tpu_custom_call.1} parent=1 // pred_fallthru
      _
    // Predicated region
    $region18: #{tpu_custom_call.1} parent=1 // pred_check
      _
    $region19: #{tpu_custom_call.1} parent=1 // pred_check_branch
      %24 = sbr.rel (0) target = $region21
    $region20: #{tpu_custom_call.1} parent=1 // pred_region
      _
    $region21: #{tpu_custom_call.1} parent=1 // pred_fallthru
      _
    // Predicated region
    $region22: #{tpu_custom_call.1} parent=1 // pred_check
      _
    $region23: #{tpu_custom_call.1} parent=1 // pred_check_branch
      %26 = sbr.rel (0) target = $region25
    $region24: #{tpu_custom_call.1} parent=1 // pred_region
      _
    $region25: #{tpu_custom_call.1} parent=1 // pred_fallthru
      _
    // Predicated region
    $region26: #{tpu_custom_call.1} parent=1 // pred_check
      _
    $region27: #{tpu_custom_call.1} parent=1 // pred_check_branch
      %28 = sbr.rel (0) target = $region29
    $region28: #{tpu_custom_call.1} parent=1 // pred_region
      _
    $region29: #{tpu_custom_call.1} parent=1 // pred_fallthru
      _
    // Predicated region
    $region30: #{tpu_custom_call.1} parent=1 // pred_check
      _
    $region31: #{tpu_custom_call.1} parent=1 // pred_check_branch
      %30 = sbr.rel (0) target = $region33
    $region32: #{tpu_custom_call.1} parent=1 // pred_region
      _
    $region33: #{tpu_custom_call.1} parent=1 // pred_fallthru
      _
    // Predicated region
    $region34: #{tpu_custom_call.1} parent=1 // pred_check
      _
    $region35: #{tpu_custom_call.1} parent=1 // pred_check_branch
      %32 = sbr.rel (0) target = $region37
    $region36: #{tpu_custom_call.1} parent=1 // pred_region
      _
    $region37: #{tpu_custom_call.1} parent=1 // pred_fallthru
      _
    %v34 = vld [vmem:[%s6] sm:$0xff]
    %v35 = vld [vmem:[%s0] sm:$0xff]
    %v36 = vld [vmem:[%s0 + $0x8] sm:$0xff]
    %v37 = vpack.c.bf16 %v36, %v35
    %v38 = vld [vmem:[%s1] sm:$0xf]
    %v39 = vld [vmem:[%s1 + $0x4] sm:$0xf]
    %v40 = vld [vmem:[%s1 + $0x8] sm:$0xf]
    %v41 = vld [vmem:[%s1 + $0xc] sm:$0xf]
    %v42 = vld [vmem:[%s1 + $0x10] sm:$0xf]
    %v43 = vld [vmem:[%s1 + $0x14] sm:$0xf]
    %v44 = vld [vmem:[%s1 + $0x18] sm:$0xf]
    %v45 = vld [vmem:[%s1 + $0x1c] sm:$0xf]
    %v54 = vunpack.c.l.b16 %v38
    %v55 = vunpack.c.l.b16 %v39
    %v56 = vunpack.c.l.b16 %v40
    %v57 = vunpack.c.l.b16 %v41
    %v58 = vunpack.c.l.b16 %v42
    %v59 = vunpack.c.l.b16 %v43
    %v60 = vunpack.c.l.b16 %v44
    %v61 = vunpack.c.l.b16 %v45
    %v62 = vpack.c.b16 %v55, %v54
    %v63 = vpack.c.b16 %v57, %v56
    %v64 = vpack.c.b16 %v59, %v58
    %v65 = vpack.c.b16 %v61, %v60
    %vm70 = vcmask 523264
    %v72 = vsel %vm70, %v37, 0
    %74 = vmatprep.subr.bf16.mxu0 0
    %75 = vmatpush1.bf16.msra.mxu0 %v62
    %76 = vmatprep.subr.bf16.mxu0 0
    %77 = vmatpush1.bf16.msra.mxu0 %v63
    %78 = vmatprep.subr.bf16.mxu0 0
    %79 = vmatpush1.bf16.msra.mxu0 %v64
    %80 = vmatprep.subr.bf16.mxu0 0
    %81 = vmatpush1.bf16.msra.mxu0 %v65
    %82 = vmatprep.subr.bf16.mxu0 0
    %83 = vmatpush1.bf16.msra.mxu0 0
    %84 = vmatprep.subr.bf16.mxu0 0
    %85 = vmatpush1.bf16.msra.mxu0 0
    %86 = vmatprep.subr.bf16.mxu0 0
    %87 = vmatpush1.bf16.msra.mxu0 0
    %88 = vmatprep.subr.bf16.mxu0 0
    %89 = vmatpush1.bf16.msra.mxu0 0
    %90 = vmatprep.subr.bf16.mxu0 0
    %91 = vmatpush1.bf16.msra.mxu0 0
    %92 = vmatprep.subr.bf16.mxu0 0
    %93 = vmatpush1.bf16.msra.mxu0 0
    %94 = vmatprep.subr.bf16.mxu0 0
    %95 = vmatpush1.bf16.msra.mxu0 0
    %96 = vmatprep.subr.bf16.mxu0 0
    %97 = vmatpush1.bf16.msra.mxu0 0
    %98 = vmatprep.subr.bf16.mxu0 0
    %99 = vmatpush1.bf16.msra.mxu0 0
    %100 = vmatprep.subr.bf16.mxu0 0
    %101 = vmatpush1.bf16.msra.mxu0 0
    %102 = vmatprep.subr.bf16.mxu0 0
    %103 = vmatpush1.bf16.msra.mxu0 0
    %104 = vmatprep.subr.bf16.mxu0 0
    %105 = vmatpush1.bf16.msra.mxu0 0
    %106 = vmatprep.mubr.bf16.mxu0 0
    %107 = vmatmul.mubr.bf16.gmra.mrb[0].mxu0 %v72
    %v108 = vpop.f32.mrb[0].mxu0
    %v109 = vadd.f32 0.0, %v108
    %v110 = vpop.f32.mrb[0].mxu0
    %v111 = vpop.f32.mrb[0].mxu0
    %v112 = vadd.f32 0.0, %v111
    %v113 = vpop.f32.mrb[0].mxu0
    %114 = vdwg.mxu0
    %vm115 = vcmask 261120
    %v116 = vsel %vm115, %v109, 0.0
    %117 = vadd.xlane.f32.xlu0 %v116
    %v118 = vpop.xlane.xlu0 %117
    %v119 = vsel %vm115, %v112, 0.0
    %120 = vadd.xlane.f32.xlu0 %v119
    %v121 = vpop.xlane.xlu0 %120
    %v122 = vrcp.pop 32.0
    %v123 = vmul.f32 %v118, %v122
    %v124 = vmul.f32 %v121, %v122
    %v125 = vsub.f32 %v109, %v123
    %v126 = vsub.f32 %v112, %v124
    %v127 = vmul.f32 %v125, %v125
    %v128 = vmul.f32 %v126, %v126
    %v129 = vsel %vm115, %v127, 0.0
    %130 = vadd.xlane.f32.xlu0 %v129
    %v131 = vpop.xlane.xlu0 %130
    %v132 = vsel %vm115, %v128, 0.0
    %133 = vadd.xlane.f32.xlu0 %v132
    %v134 = vpop.xlane.xlu0 %133
    %v135 = vmul.f32 %v131, %v122
    %v136 = vmul.f32 %v134, %v122
    %v137 = vadd.f32 %v135, 1e-05
    %v138 = vadd.f32 %v136, 1e-05
    %v139 = vrsqrt.pop %v137
    %v140 = vrsqrt.pop %v138
    %v141 = vmul.f32 %v125, %v139
    %v142 = vmul.f32 %v126, %v140
    %v143 = vlaneseq
    %v144 = vshrl.u32 %v143, 7
    %v145 = vsub.s32 0, %v144
    %v146 = vrot.slane %v34, %v145
    %v147 = vmul.f32 %v141, %v146
    %v148 = vmul.f32 %v142, %v146
    %v149 = vlaneseq
    %v150 = vshrl.u32 %v149, 7
    %v151 = vsub.s32 1, %v150
    %v152 = vrot.slane %v34, %v151
    %v153 = vadd.f32 %v147, %v152
    %v154 = vadd.f32 %v148, %v152
    %v155 = vpack.c.bf16 %v154, %v153
    %v156 = vld [vmem:[%s2] sm:$0xf]
    %v157 = vld [vmem:[%s2 + $0x4] sm:$0xf]
    %v158 = vld [vmem:[%s2 + $0x8] sm:$0xf]
    %v159 = vld [vmem:[%s2 + $0xc] sm:$0xf]
    %v160 = vld [vmem:[%s7] sm:$0x1]
    %v162 = vlaneseq
    %v163 = vshrl.u32 %v162, 7
    %v164 = vsub.s32 0, %v163
    %v165 = vrot.slane %v160, %v164
    %v171 = vunpack.c.l.b16 %v156
    %v172 = vunpack.c.l.b16 %v157
    %v173 = vunpack.c.l.b16 %v158
    %v174 = vunpack.c.l.b16 %v159
    %v175 = vpack.c.b16 %v172, %v171
    %v176 = vpack.c.b16 %v174, %v173
    %v180 = vsel %vm115, %v155, 0
    %182 = vmatprep.subr.bf16.mxu0 0
    %183 = vmatpush1.bf16.msra.mxu0 %v175
    %184 = vmatprep.subr.bf16.mxu0 0
    %185 = vmatpush1.bf16.msra.mxu0 %v176
    %186 = vmatprep.subr.bf16.mxu0 0
    %187 = vmatpush1.bf16.msra.mxu0 0
    %188 = vmatprep.subr.bf16.mxu0 0
    %189 = vmatpush1.bf16.msra.mxu0 0
    %190 = vmatprep.subr.bf16.mxu0 0
    %191 = vmatpush1.bf16.msra.mxu0 0
    %192 = vmatprep.subr.bf16.mxu0 0
    %193 = vmatpush1.bf16.msra.mxu0 0
    %194 = vmatprep.subr.bf16.mxu0 0
    %195 = vmatpush1.bf16.msra.mxu0 0
    %196 = vmatprep.subr.bf16.mxu0 0
    %197 = vmatpush1.bf16.msra.mxu0 0
    %198 = vmatprep.subr.bf16.mxu0 0
    %199 = vmatpush1.bf16.msra.mxu0 0
    %200 = vmatprep.subr.bf16.mxu0 0
    %201 = vmatpush1.bf16.msra.mxu0 0
    %202 = vmatprep.subr.bf16.mxu0 0
    %203 = vmatpush1.bf16.msra.mxu0 0
    %204 = vmatprep.subr.bf16.mxu0 0
    %205 = vmatpush1.bf16.msra.mxu0 0
    %206 = vmatprep.subr.bf16.mxu0 0
    %207 = vmatpush1.bf16.msra.mxu0 0
    %208 = vmatprep.subr.bf16.mxu0 0
    %209 = vmatpush1.bf16.msra.mxu0 0
    %210 = vmatprep.subr.bf16.mxu0 0
    %211 = vmatpush1.bf16.msra.mxu0 0
    %212 = vmatprep.subr.bf16.mxu0 0
    %213 = vmatpush1.bf16.msra.mxu0 0
    %214 = vmatprep.mubr.bf16.mxu0 0
    %215 = vmatmul.mubr.bf16.gmra.mrb[0].mxu0 %v180
    %v216 = vpop.f32.mrb[0].mxu0
    %v217 = vadd.f32 %v165, %v216
    %v218 = vpop.f32.mrb[0].mxu0
    %v219 = vpop.f32.mrb[0].mxu0
    %v220 = vadd.f32 %v165, %v219
    %v221 = vpop.f32.mrb[0].mxu0
    %222 = vdwg.mxu0
    %v223 = vmul.f32 %v217, 0.35355338
    %v224 = vmul.f32 %v220, 0.35355338
    %226 = vrot.lane.b32.xlu0 %v217, 96
    %v227 = vpop.permute.xlu0 %226
    %vm228 = vcmask 64512
    %v230 = vsel %vm228, %v223, 0
    %v232 = vsel %vm228, %v227, 0
    %234 = vmatprep.subr.mxu0 0.0
    %235 = vmatpush1.xpose.msra.mxu0 %v232
    %236 = vmatprep.subr.mxu0 0.0
    %237 = vmatpush1.xpose.msra.mxu0 0.0
    %238 = vmatprep.subr.mxu0 0.0
    %239 = vmatpush1.xpose.msra.mxu0 0.0
    %240 = vmatprep.subr.mxu0 0.0
    %241 = vmatpush1.xpose.msra.mxu0 0.0
    %242 = vmatprep.subr.mxu0 0.0
    %243 = vmatpush1.xpose.msra.mxu0 0.0
    %244 = vmatprep.subr.mxu0 0.0
    %245 = vmatpush1.xpose.msra.mxu0 0.0
    %246 = vmatprep.subr.mxu0 0.0
    %247 = vmatpush1.xpose.msra.mxu0 0.0
    %248 = vmatprep.subr.mxu0 0.0
    %249 = vmatpush1.xpose.msra.mxu0 0.0
    %250 = vmatprep.subr.mxu0 0.0
    %251 = vmatpush1.xpose.msra.mxu0 0.0
    %252 = vmatprep.subr.mxu0 0.0
    %253 = vmatpush1.xpose.msra.mxu0 0.0
    %254 = vmatprep.subr.mxu0 0.0
    %255 = vmatpush1.xpose.msra.mxu0 0.0
    %256 = vmatprep.subr.mxu0 0.0
    %257 = vmatpush1.xpose.msra.mxu0 0.0
    %258 = vmatprep.subr.mxu0 0.0
    %259 = vmatpush1.xpose.msra.mxu0 0.0
    %260 = vmatprep.subr.mxu0 0.0
    %261 = vmatpush1.xpose.msra.mxu0 0.0
    %262 = vmatprep.subr.mxu0 0.0
    %263 = vmatpush1.xpose.msra.mxu0 0.0
    %264 = vmatprep.subr.mxu0 0.0
    %265 = vmatpush1.xpose.msra.mxu0 0.0
    %266 = vmatprep.subr.mxu0 0.0
    %267 = vmatpush1.xpose.msra.mxu0 0.0
    %268 = vmatprep.subr.mxu0 0.0
    %269 = vmatpush1.xpose.msra.mxu0 0.0
    %270 = vmatprep.subr.mxu0 0.0
    %271 = vmatpush1.xpose.msra.mxu0 0.0
    %272 = vmatprep.subr.mxu0 0.0
    %273 = vmatpush1.xpose.msra.mxu0 0.0
    %274 = vmatprep.subr.mxu0 0.0
    %275 = vmatpush1.xpose.msra.mxu0 0.0
    %276 = vmatprep.subr.mxu0 0.0
    %277 = vmatpush1.xpose.msra.mxu0 0.0
    %278 = vmatprep.subr.mxu0 0.0
    %279 = vmatpush1.xpose.msra.mxu0 0.0
    %280 = vmatprep.subr.mxu0 0.0
    %281 = vmatpush1.xpose.msra.mxu0 0.0
    %282 = vmatprep.subr.mxu0 0.0
    %283 = vmatpush1.xpose.msra.mxu0 0.0
    %284 = vmatprep.subr.mxu0 0.0
    %285 = vmatpush1.xpose.msra.mxu0 0.0
    %286 = vmatprep.subr.mxu0 0.0
    %287 = vmatpush1.xpose.msra.mxu0 0.0
    %288 = vmatprep.subr.mxu0 0.0
    %289 = vmatpush1.xpose.msra.mxu0 0.0
    %290 = vmatprep.subr.mxu0 0.0
    %291 = vmatpush1.xpose.msra.mxu0 0.0
    %292 = vmatprep.subr.mxu0 0.0
    %293 = vmatpush1.xpose.msra.mxu0 0.0
    %294 = vmatprep.subr.mxu0 0.0
    %295 = vmatpush1.xpose.msra.mxu0 0.0
    %296 = vmatprep.subr.mxu0 0.0
    %297 = vmatpush1.xpose.msra.mxu0 0.0
    %298 = vmatprep.mubr.f32.mxu0 0.0
    %299 = vmatmul.mubr.f32.gmra.mrb[0].mxu0 %v230
    %v300 = vpop.f32.mrb[0].mxu0
    %v301 = vadd.f32 0.0, %v300
    %v302 = vpop.f32.mrb[0].mxu0
    %303 = vdwg.mxu0
    %305 = vrot.lane.b32.xlu0 %v220, 96
    %v306 = vpop.permute.xlu0 %305
    %v308 = vsel %vm228, %v224, 0
    %v310 = vsel %vm228, %v306, 0
    %312 = vmatprep.subr.mxu0 0.0
    %313 = vmatpush1.xpose.msra.mxu0 %v310
    %314 = vmatprep.subr.mxu0 0.0
    %315 = vmatpush1.xpose.msra.mxu0 0.0
    %316 = vmatprep.subr.mxu0 0.0
    %317 = vmatpush1.xpose.msra.mxu0 0.0
    %318 = vmatprep.subr.mxu0 0.0
    %319 = vmatpush1.xpose.msra.mxu0 0.0
    %320 = vmatprep.subr.mxu0 0.0
    %321 = vmatpush1.xpose.msra.mxu0 0.0
    %322 = vmatprep.subr.mxu0 0.0
    %323 = vmatpush1.xpose.msra.mxu0 0.0
    %324 = vmatprep.subr.mxu0 0.0
    %325 = vmatpush1.xpose.msra.mxu0 0.0
    %326 = vmatprep.subr.mxu0 0.0
    %327 = vmatpush1.xpose.msra.mxu0 0.0
    %328 = vmatprep.subr.mxu0 0.0
    %329 = vmatpush1.xpose.msra.mxu0 0.0
    %330 = vmatprep.subr.mxu0 0.0
    %331 = vmatpush1.xpose.msra.mxu0 0.0
    %332 = vmatprep.subr.mxu0 0.0
    %333 = vmatpush1.xpose.msra.mxu0 0.0
    %334 = vmatprep.subr.mxu0 0.0
    %335 = vmatpush1.xpose.msra.mxu0 0.0
    %336 = vmatprep.subr.mxu0 0.0
    %337 = vmatpush1.xpose.msra.mxu0 0.0
    %338 = vmatprep.subr.mxu0 0.0
    %339 = vmatpush1.xpose.msra.mxu0 0.0
    %340 = vmatprep.subr.mxu0 0.0
    %341 = vmatpush1.xpose.msra.mxu0 0.0
    %342 = vmatprep.subr.mxu0 0.0
    %343 = vmatpush1.xpose.msra.mxu0 0.0
    %344 = vmatprep.subr.mxu0 0.0
    %345 = vmatpush1.xpose.msra.mxu0 0.0
    %346 = vmatprep.subr.mxu0 0.0
    %347 = vmatpush1.xpose.msra.mxu0 0.0
    %348 = vmatprep.subr.mxu0 0.0
    %349 = vmatpush1.xpose.msra.mxu0 0.0
    %350 = vmatprep.subr.mxu0 0.0
    %351 = vmatpush1.xpose.msra.mxu0 0.0
    %352 = vmatprep.subr.mxu0 0.0
    %353 = vmatpush1.xpose.msra.mxu0 0.0
    %354 = vmatprep.subr.mxu0 0.0
    %355 = vmatpush1.xpose.msra.mxu0 0.0
    %356 = vmatprep.subr.mxu0 0.0
    %357 = vmatpush1.xpose.msra.mxu0 0.0
    %358 = vmatprep.subr.mxu0 0.0
    %359 = vmatpush1.xpose.msra.mxu0 0.0
    %360 = vmatprep.subr.mxu0 0.0
    %361 = vmatpush1.xpose.msra.mxu0 0.0
    %362 = vmatprep.subr.mxu0 0.0
    %363 = vmatpush1.xpose.msra.mxu0 0.0
    %364 = vmatprep.subr.mxu0 0.0
    %365 = vmatpush1.xpose.msra.mxu0 0.0
    %366 = vmatprep.subr.mxu0 0.0
    %367 = vmatpush1.xpose.msra.mxu0 0.0
    %368 = vmatprep.subr.mxu0 0.0
    %369 = vmatpush1.xpose.msra.mxu0 0.0
    %370 = vmatprep.subr.mxu0 0.0
    %371 = vmatpush1.xpose.msra.mxu0 0.0
    %372 = vmatprep.subr.mxu0 0.0
    %373 = vmatpush1.xpose.msra.mxu0 0.0
    %374 = vmatprep.subr.mxu0 0.0
    %375 = vmatpush1.xpose.msra.mxu0 0.0
    %376 = vmatprep.mubr.f32.mxu0 0.0
    %377 = vmatmul.mubr.f32.gmra.mrb[0].mxu0 %v308
    %v378 = vpop.f32.mrb[0].mxu0
    %v379 = vadd.f32 0.0, %v378
    %v380 = vpop.f32.mrb[0].mxu0
    %381 = vdwg.mxu0
    %v382 = vsel %vm228, %v301, -inf
    %383 = vmax.xlane.f32.xlu0 %v382
    %v384 = vpop.xlane.xlu0 %383
    %v385 = vsel %vm228, %v379, -inf
    %386 = vmax.xlane.f32.xlu0 %v385
    %v387 = vpop.xlane.xlu0 %386
    %v388 = vsub.f32 %v301, %v384
    %v389 = vsub.f32 %v379, %v387
    %v390 = vmul.f32 %v388, 1.442695
    %v391 = vpow.pop %v390
    %v392 = vmul.f32 %v389, 1.442695
    %v393 = vpow.pop %v392
    %v394 = vsel %vm228, %v391, 0.0
    %395 = vadd.xlane.f32.xlu0 %v394
    %v396 = vpop.xlane.xlu0 %395
    %v397 = vsel %vm228, %v393, 0.0
    %398 = vadd.xlane.f32.xlu0 %v397
    %v399 = vpop.xlane.xlu0 %398
    %v400 = vrcp.pop %v396
    %v401 = vrcp.pop %v399
    %v402 = vmul.f32 %v391, %v400
    %v403 = vmul.f32 %v393, %v401
    %404 = vrot.lane.b32.xlu0 %v217, 64
    %v405 = vpop.permute.xlu0 %404
    %v408 = vsel %vm228, %v402, 0
    %410 = vmatprep.subr.mxu0 0.0
    %411 = vmatpush1.msra.mxu0 %v405
    %412 = vmatprep.subr.mxu0 0.0
    %413 = vmatpush1.msra.mxu0 0.0
    %414 = vmatprep.subr.mxu0 0.0
    %415 = vmatpush1.msra.mxu0 0.0
    %416 = vmatprep.subr.mxu0 0.0
    %417 = vmatpush1.msra.mxu0 0.0
    %418 = vmatprep.subr.mxu0 0.0
    %419 = vmatpush1.msra.mxu0 0.0
    %420 = vmatprep.subr.mxu0 0.0
    %421 = vmatpush1.msra.mxu0 0.0
    %422 = vmatprep.subr.mxu0 0.0
    %423 = vmatpush1.msra.mxu0 0.0
    %424 = vmatprep.subr.mxu0 0.0
    %425 = vmatpush1.msra.mxu0 0.0
    %426 = vmatprep.subr.mxu0 0.0
    %427 = vmatpush1.msra.mxu0 0.0
    %428 = vmatprep.subr.mxu0 0.0
    %429 = vmatpush1.msra.mxu0 0.0
    %430 = vmatprep.subr.mxu0 0.0
    %431 = vmatpush1.msra.mxu0 0.0
    %432 = vmatprep.subr.mxu0 0.0
    %433 = vmatpush1.msra.mxu0 0.0
    %434 = vmatprep.subr.mxu0 0.0
    %435 = vmatpush1.msra.mxu0 0.0
    %436 = vmatprep.subr.mxu0 0.0
    %437 = vmatpush1.msra.mxu0 0.0
    %438 = vmatprep.subr.mxu0 0.0
    %439 = vmatpush1.msra.mxu0 0.0
    %440 = vmatprep.subr.mxu0 0.0
    %441 = vmatpush1.msra.mxu0 0.0
    %442 = vmatprep.subr.mxu0 0.0
    %443 = vmatpush1.msra.mxu0 0.0
    %444 = vmatprep.subr.mxu0 0.0
    %445 = vmatpush1.msra.mxu0 0.0
    %446 = vmatprep.subr.mxu0 0.0
    %447 = vmatpush1.msra.mxu0 0.0
    %448 = vmatprep.subr.mxu0 0.0
    %449 = vmatpush1.msra.mxu0 0.0
    %450 = vmatprep.subr.mxu0 0.0
    %451 = vmatpush1.msra.mxu0 0.0
    %452 = vmatprep.subr.mxu0 0.0
    %453 = vmatpush1.msra.mxu0 0.0
    %454 = vmatprep.subr.mxu0 0.0
    %455 = vmatpush1.msra.mxu0 0.0
    %456 = vmatprep.subr.mxu0 0.0
    %457 = vmatpush1.msra.mxu0 0.0
    %458 = vmatprep.subr.mxu0 0.0
    %459 = vmatpush1.msra.mxu0 0.0
    %460 = vmatprep.subr.mxu0 0.0
    %461 = vmatpush1.msra.mxu0 0.0
    %462 = vmatprep.subr.mxu0 0.0
    %463 = vmatpush1.msra.mxu0 0.0
    %464 = vmatprep.subr.mxu0 0.0
    %465 = vmatpush1.msra.mxu0 0.0
    %466 = vmatprep.subr.mxu0 0.0
    %467 = vmatpush1.msra.mxu0 0.0
    %468 = vmatprep.subr.mxu0 0.0
    %469 = vmatpush1.msra.mxu0 0.0
    %470 = vmatprep.subr.mxu0 0.0
    %471 = vmatpush1.msra.mxu0 0.0
    %472 = vmatprep.subr.mxu0 0.0
    %473 = vmatpush1.msra.mxu0 0.0
    %474 = vmatprep.mubr.f32.mxu0 0.0
    %475 = vmatmul.mubr.f32.gmra.mrb[0].mxu0 %v408
    %v476 = vpop.f32.mrb[0].mxu0
    %v477 = vadd.f32 0.0, %v476
    %v478 = vpop.f32.mrb[0].mxu0
    %479 = vdwg.mxu0
    %480 = vrot.lane.b32.xlu0 %v220, 64
    %v481 = vpop.permute.xlu0 %480
    %v484 = vsel %vm228, %v403, 0
    %486 = vmatprep.subr.mxu0 0.0
    %487 = vmatpush1.msra.mxu0 %v481
    %488 = vmatprep.subr.mxu0 0.0
    %489 = vmatpush1.msra.mxu0 0.0
    %490 = vmatprep.subr.mxu0 0.0
    %491 = vmatpush1.msra.mxu0 0.0
    %492 = vmatprep.subr.mxu0 0.0
    %493 = vmatpush1.msra.mxu0 0.0
    %494 = vmatprep.subr.mxu0 0.0
    %495 = vmatpush1.msra.mxu0 0.0
    %496 = vmatprep.subr.mxu0 0.0
    %497 = vmatpush1.msra.mxu0 0.0
    %498 = vmatprep.subr.mxu0 0.0
    %499 = vmatpush1.msra.mxu0 0.0
    %500 = vmatprep.subr.mxu0 0.0
    %501 = vmatpush1.msra.mxu0 0.0
    %502 = vmatprep.subr.mxu0 0.0
    %503 = vmatpush1.msra.mxu0 0.0
    %504 = vmatprep.subr.mxu0 0.0
    %505 = vmatpush1.msra.mxu0 0.0
    %506 = vmatprep.subr.mxu0 0.0
    %507 = vmatpush1.msra.mxu0 0.0
    %508 = vmatprep.subr.mxu0 0.0
    %509 = vmatpush1.msra.mxu0 0.0
    %510 = vmatprep.subr.mxu0 0.0
    %511 = vmatpush1.msra.mxu0 0.0
    %512 = vmatprep.subr.mxu0 0.0
    %513 = vmatpush1.msra.mxu0 0.0
    %514 = vmatprep.subr.mxu0 0.0
    %515 = vmatpush1.msra.mxu0 0.0
    %516 = vmatprep.subr.mxu0 0.0
    %517 = vmatpush1.msra.mxu0 0.0
    %518 = vmatprep.subr.mxu0 0.0
    %519 = vmatpush1.msra.mxu0 0.0
    %520 = vmatprep.subr.mxu0 0.0
    %521 = vmatpush1.msra.mxu0 0.0
    %522 = vmatprep.subr.mxu0 0.0
    %523 = vmatpush1.msra.mxu0 0.0
    %524 = vmatprep.subr.mxu0 0.0
    %525 = vmatpush1.msra.mxu0 0.0
    %526 = vmatprep.subr.mxu0 0.0
    %527 = vmatpush1.msra.mxu0 0.0
    %528 = vmatprep.subr.mxu0 0.0
    %529 = vmatpush1.msra.mxu0 0.0
    %530 = vmatprep.subr.mxu0 0.0
    %531 = vmatpush1.msra.mxu0 0.0
    %532 = vmatprep.subr.mxu0 0.0
    %533 = vmatpush1.msra.mxu0 0.0
    %534 = vmatprep.subr.mxu0 0.0
    %535 = vmatpush1.msra.mxu0 0.0
    %536 = vmatprep.subr.mxu0 0.0
    %537 = vmatpush1.msra.mxu0 0.0
    %538 = vmatprep.subr.mxu0 0.0
    %539 = vmatpush1.msra.mxu0 0.0
    %540 = vmatprep.subr.mxu0 0.0
    %541 = vmatpush1.msra.mxu0 0.0
    %542 = vmatprep.subr.mxu0 0.0
    %543 = vmatpush1.msra.mxu0 0.0
    %544 = vmatprep.subr.mxu0 0.0
    %545 = vmatpush1.msra.mxu0 0.0
    %546 = vmatprep.subr.mxu0 0.0
    %547 = vmatpush1.msra.mxu0 0.0
    %548 = vmatprep.subr.mxu0 0.0
    %549 = vmatpush1.msra.mxu0 0.0
    %550 = vmatprep.mubr.f32.mxu0 0.0
    %551 = vmatmul.mubr.f32.gmra.mrb[0].mxu0 %v484
    %v552 = vpop.f32.mrb[0].mxu0
    %v553 = vadd.f32 0.0, %v552
    %v554 = vpop.f32.mrb[0].mxu0
    %555 = vdwg.mxu0
    %556 = vrot.lane.b32.xlu0 %v223, 120
    %v557 = vpop.permute.xlu0 %556
    %558 = vrot.lane.b32.xlu0 %v217, 88
    %v559 = vpop.permute.xlu0 %558
    %v560 = vsel %vm228, %v557, 0
    %v562 = vsel %vm228, %v559, 0
    %564 = vmatprep.subr.mxu0 0.0
    %565 = vmatpush1.xpose.msra.mxu0 %v562
    %566 = vmatprep.subr.mxu0 0.0
    %567 = vmatpush1.xpose.msra.mxu0 0.0
    %568 = vmatprep.subr.mxu0 0.0
    %569 = vmatpush1.xpose.msra.mxu0 0.0
    %570 = vmatprep.subr.mxu0 0.0
    %571 = vmatpush1.xpose.msra.mxu0 0.0
    %572 = vmatprep.subr.mxu0 0.0
    %573 = vmatpush1.xpose.msra.mxu0 0.0
    %574 = vmatprep.subr.mxu0 0.0
    %575 = vmatpush1.xpose.msra.mxu0 0.0
    %576 = vmatprep.subr.mxu0 0.0
    %577 = vmatpush1.xpose.msra.mxu0 0.0
    %578 = vmatprep.subr.mxu0 0.0
    %579 = vmatpush1.xpose.msra.mxu0 0.0
    %580 = vmatprep.subr.mxu0 0.0
    %581 = vmatpush1.xpose.msra.mxu0 0.0
    %582 = vmatprep.subr.mxu0 0.0
    %583 = vmatpush1.xpose.msra.mxu0 0.0
    %584 = vmatprep.subr.mxu0 0.0
    %585 = vmatpush1.xpose.msra.mxu0 0.0
    %586 = vmatprep.subr.mxu0 0.0
    %587 = vmatpush1.xpose.msra.mxu0 0.0
    %588 = vmatprep.subr.mxu0 0.0
    %589 = vmatpush1.xpose.msra.mxu0 0.0
    %590 = vmatprep.subr.mxu0 0.0
    %591 = vmatpush1.xpose.msra.mxu0 0.0
    %592 = vmatprep.subr.mxu0 0.0
    %593 = vmatpush1.xpose.msra.mxu0 0.0
    %594 = vmatprep.subr.mxu0 0.0
    %595 = vmatpush1.xpose.msra.mxu0 0.0
    %596 = vmatprep.subr.mxu0 0.0
    %597 = vmatpush1.xpose.msra.mxu0 0.0
    %598 = vmatprep.subr.mxu0 0.0
    %599 = vmatpush1.xpose.msra.mxu0 0.0
    %600 = vmatprep.subr.mxu0 0.0
    %601 = vmatpush1.xpose.msra.mxu0 0.0
    %602 = vmatprep.subr.mxu0 0.0
    %603 = vmatpush1.xpose.msra.mxu0 0.0
    %604 = vmatprep.subr.mxu0 0.0
    %605 = vmatpush1.xpose.msra.mxu0 0.0
    %606 = vmatprep.subr.mxu0 0.0
    %607 = vmatpush1.xpose.msra.mxu0 0.0
    %608 = vmatprep.subr.mxu0 0.0
    %609 = vmatpush1.xpose.msra.mxu0 0.0
    %610 = vmatprep.subr.mxu0 0.0
    %611 = vmatpush1.xpose.msra.mxu0 0.0
    %612 = vmatprep.subr.mxu0 0.0
    %613 = vmatpush1.xpose.msra.mxu0 0.0
    %614 = vmatprep.subr.mxu0 0.0
    %615 = vmatpush1.xpose.msra.mxu0 0.0
    %616 = vmatprep.subr.mxu0 0.0
    %617 = vmatpush1.xpose.msra.mxu0 0.0
    %618 = vmatprep.subr.mxu0 0.0
    %619 = vmatpush1.xpose.msra.mxu0 0.0
    %620 = vmatprep.subr.mxu0 0.0
    %621 = vmatpush1.xpose.msra.mxu0 0.0
    %622 = vmatprep.subr.mxu0 0.0
    %623 = vmatpush1.xpose.msra.mxu0 0.0
    %624 = vmatprep.subr.mxu0 0.0
    %625 = vmatpush1.xpose.msra.mxu0 0.0
    %626 = vmatprep.subr.mxu0 0.0
    %627 = vmatpush1.xpose.msra.mxu0 0.0
    %628 = vmatprep.mubr.f32.mxu0 0.0
    %629 = vmatmul.mubr.f32.gmra.mrb[0].mxu0 %v560
    %v630 = vpop.f32.mrb[0].mxu0
    %v631 = vadd.f32 0.0, %v630
    %v632 = vpop.f32.mrb[0].mxu0
    %633 = vdwg.mxu0
    %634 = vrot.lane.b32.xlu0 %v224, 120
    %v635 = vpop.permute.xlu0 %634
    %636 = vrot.lane.b32.xlu0 %v220, 88
    %v637 = vpop.permute.xlu0 %636
    %v638 = vsel %vm228, %v635, 0
    %v640 = vsel %vm228, %v637, 0
    %642 = vmatprep.subr.mxu0 0.0
    %643 = vmatpush1.xpose.msra.mxu0 %v640
    %644 = vmatprep.subr.mxu0 0.0
    %645 = vmatpush1.xpose.msra.mxu0 0.0
    %646 = vmatprep.subr.mxu0 0.0
    %647 = vmatpush1.xpose.msra.mxu0 0.0
    %648 = vmatprep.subr.mxu0 0.0
    %649 = vmatpush1.xpose.msra.mxu0 0.0
    %650 = vmatprep.subr.mxu0 0.0
    %651 = vmatpush1.xpose.msra.mxu0 0.0
    %652 = vmatprep.subr.mxu0 0.0
    %653 = vmatpush1.xpose.msra.mxu0 0.0
    %654 = vmatprep.subr.mxu0 0.0
    %655 = vmatpush1.xpose.msra.mxu0 0.0
    %656 = vmatprep.subr.mxu0 0.0
    %657 = vmatpush1.xpose.msra.mxu0 0.0
    %658 = vmatprep.subr.mxu0 0.0
    %659 = vmatpush1.xpose.msra.mxu0 0.0
    %660 = vmatprep.subr.mxu0 0.0
    %661 = vmatpush1.xpose.msra.mxu0 0.0
    %662 = vmatprep.subr.mxu0 0.0
    %663 = vmatpush1.xpose.msra.mxu0 0.0
    %664 = vmatprep.subr.mxu0 0.0
    %665 = vmatpush1.xpose.msra.mxu0 0.0
    %666 = vmatprep.subr.mxu0 0.0
    %667 = vmatpush1.xpose.msra.mxu0 0.0
    %668 = vmatprep.subr.mxu0 0.0
    %669 = vmatpush1.xpose.msra.mxu0 0.0
    %670 = vmatprep.subr.mxu0 0.0
    %671 = vmatpush1.xpose.msra.mxu0 0.0
    %672 = vmatprep.subr.mxu0 0.0
    %673 = vmatpush1.xpose.msra.mxu0 0.0
    %674 = vmatprep.subr.mxu0 0.0
    %675 = vmatpush1.xpose.msra.mxu0 0.0
    %676 = vmatprep.subr.mxu0 0.0
    %677 = vmatpush1.xpose.msra.mxu0 0.0
    %678 = vmatprep.subr.mxu0 0.0
    %679 = vmatpush1.xpose.msra.mxu0 0.0
    %680 = vmatprep.subr.mxu0 0.0
    %681 = vmatpush1.xpose.msra.mxu0 0.0
    %682 = vmatprep.subr.mxu0 0.0
    %683 = vmatpush1.xpose.msra.mxu0 0.0
    %684 = vmatprep.subr.mxu0 0.0
    %685 = vmatpush1.xpose.msra.mxu0 0.0
    %686 = vmatprep.subr.mxu0 0.0
    %687 = vmatpush1.xpose.msra.mxu0 0.0
    %688 = vmatprep.subr.mxu0 0.0
    %689 = vmatpush1.xpose.msra.mxu0 0.0
    %690 = vmatprep.subr.mxu0 0.0
    %691 = vmatpush1.xpose.msra.mxu0 0.0
    %692 = vmatprep.subr.mxu0 0.0
    %693 = vmatpush1.xpose.msra.mxu0 0.0
    %694 = vmatprep.subr.mxu0 0.0
    %695 = vmatpush1.xpose.msra.mxu0 0.0
    %696 = vmatprep.subr.mxu0 0.0
    %697 = vmatpush1.xpose.msra.mxu0 0.0
    %698 = vmatprep.subr.mxu0 0.0
    %699 = vmatpush1.xpose.msra.mxu0 0.0
    %700 = vmatprep.subr.mxu0 0.0
    %701 = vmatpush1.xpose.msra.mxu0 0.0
    %702 = vmatprep.subr.mxu0 0.0
    %703 = vmatpush1.xpose.msra.mxu0 0.0
    %704 = vmatprep.subr.mxu0 0.0
    %705 = vmatpush1.xpose.msra.mxu0 0.0
    %706 = vmatprep.mubr.f32.mxu0 0.0
    %707 = vmatmul.mubr.f32.gmra.mrb[0].mxu0 %v638
    %v708 = vpop.f32.mrb[0].mxu0
    %v709 = vadd.f32 0.0, %v708
    %v710 = vpop.f32.mrb[0].mxu0
    %711 = vdwg.mxu0
    %v712 = vsel %vm228, %v631, -inf
    %713 = vmax.xlane.f32.xlu0 %v712
    %v714 = vpop.xlane.xlu0 %713
    %v715 = vsel %vm228, %v709, -inf
    %716 = vmax.xlane.f32.xlu0 %v715
    %v717 = vpop.xlane.xlu0 %716
    %v718 = vsub.f32 %v631, %v714
    %v719 = vsub.f32 %v709, %v717
    %v720 = vmul.f32 %v718, 1.442695
    %v721 = vpow.pop %v720
    %v722 = vmul.f32 %v719, 1.442695
    %v723 = vpow.pop %v722
    %v724 = vsel %vm228, %v721, 0.0
    %725 = vadd.xlane.f32.xlu0 %v724
    %v726 = vpop.xlane.xlu0 %725
    %v727 = vsel %vm228, %v723, 0.0
    %728 = vadd.xlane.f32.xlu0 %v727
    %v729 = vpop.xlane.xlu0 %728
    %v730 = vrcp.pop %v726
    %v731 = vrcp.pop %v729
    %v732 = vmul.f32 %v721, %v730
    %v733 = vmul.f32 %v723, %v731
    %734 = vrot.lane.b32.xlu0 %v217, 56
    %v735 = vpop.permute.xlu0 %734
    %v738 = vsel %vm228, %v732, 0
    %740 = vmatprep.subr.mxu0 0.0
    %741 = vmatpush1.msra.mxu0 %v735
    %742 = vmatprep.subr.mxu0 0.0
    %743 = vmatpush1.msra.mxu0 0.0
    %744 = vmatprep.subr.mxu0 0.0
    %745 = vmatpush1.msra.mxu0 0.0
    %746 = vmatprep.subr.mxu0 0.0
    %747 = vmatpush1.msra.mxu0 0.0
    %748 = vmatprep.subr.mxu0 0.0
    %749 = vmatpush1.msra.mxu0 0.0
    %750 = vmatprep.subr.mxu0 0.0
    %751 = vmatpush1.msra.mxu0 0.0
    %752 = vmatprep.subr.mxu0 0.0
    %753 = vmatpush1.msra.mxu0 0.0
    %754 = vmatprep.subr.mxu0 0.0
    %755 = vmatpush1.msra.mxu0 0.0
    %756 = vmatprep.subr.mxu0 0.0
    %757 = vmatpush1.msra.mxu0 0.0
    %758 = vmatprep.subr.mxu0 0.0
    %759 = vmatpush1.msra.mxu0 0.0
    %760 = vmatprep.subr.mxu0 0.0
    %761 = vmatpush1.msra.mxu0 0.0
    %762 = vmatprep.subr.mxu0 0.0
    %763 = vmatpush1.msra.mxu0 0.0
    %764 = vmatprep.subr.mxu0 0.0
    %765 = vmatpush1.msra.mxu0 0.0
    %766 = vmatprep.subr.mxu0 0.0
    %767 = vmatpush1.msra.mxu0 0.0
    %768 = vmatprep.subr.mxu0 0.0
    %769 = vmatpush1.msra.mxu0 0.0
    %770 = vmatprep.subr.mxu0 0.0
    %771 = vmatpush1.msra.mxu0 0.0
    %772 = vmatprep.subr.mxu0 0.0
    %773 = vmatpush1.msra.mxu0 0.0
    %774 = vmatprep.subr.mxu0 0.0
    %775 = vmatpush1.msra.mxu0 0.0
    %776 = vmatprep.subr.mxu0 0.0
    %777 = vmatpush1.msra.mxu0 0.0
    %778 = vmatprep.subr.mxu0 0.0
    %779 = vmatpush1.msra.mxu0 0.0
    %780 = vmatprep.subr.mxu0 0.0
    %781 = vmatpush1.msra.mxu0 0.0
    %782 = vmatprep.subr.mxu0 0.0
    %783 = vmatpush1.msra.mxu0 0.0
    %784 = vmatprep.subr.mxu0 0.0
    %785 = vmatpush1.msra.mxu0 0.0
    %786 = vmatprep.subr.mxu0 0.0
    %787 = vmatpush1.msra.mxu0 0.0
    %788 = vmatprep.subr.mxu0 0.0
    %789 = vmatpush1.msra.mxu0 0.0
    %790 = vmatprep.subr.mxu0 0.0
    %791 = vmatpush1.msra.mxu0 0.0
    %792 = vmatprep.subr.mxu0 0.0
    %793 = vmatpush1.msra.mxu0 0.0
    %794 = vmatprep.subr.mxu0 0.0
    %795 = vmatpush1.msra.mxu0 0.0
    %796 = vmatprep.subr.mxu0 0.0
    %797 = vmatpush1.msra.mxu0 0.0
    %798 = vmatprep.subr.mxu0 0.0
    %799 = vmatpush1.msra.mxu0 0.0
    %800 = vmatprep.subr.mxu0 0.0
    %801 = vmatpush1.msra.mxu0 0.0
    %802 = vmatprep.subr.mxu0 0.0
    %803 = vmatpush1.msra.mxu0 0.0
    %804 = vmatprep.mubr.f32.mxu0 0.0
    %805 = vmatmul.mubr.f32.gmra.mrb[0].mxu0 %v738
    %v806 = vpop.f32.mrb[0].mxu0
    %v807 = vadd.f32 0.0, %v806
    %v808 = vpop.f32.mrb[0].mxu0
    %809 = vdwg.mxu0
    %810 = vrot.lane.b32.xlu0 %v220, 56
    %v811 = vpop.permute.xlu0 %810
    %v814 = vsel %vm228, %v733, 0
    %816 = vmatprep.subr.mxu0 0.0
    %817 = vmatpush1.msra.mxu0 %v811
    %818 = vmatprep.subr.mxu0 0.0
    %819 = vmatpush1.msra.mxu0 0.0
    %820 = vmatprep.subr.mxu0 0.0
    %821 = vmatpush1.msra.mxu0 0.0
    %822 = vmatprep.subr.mxu0 0.0
    %823 = vmatpush1.msra.mxu0 0.0
    %824 = vmatprep.subr.mxu0 0.0
    %825 = vmatpush1.msra.mxu0 0.0
    %826 = vmatprep.subr.mxu0 0.0
    %827 = vmatpush1.msra.mxu0 0.0
    %828 = vmatprep.subr.mxu0 0.0
    %829 = vmatpush1.msra.mxu0 0.0
    %830 = vmatprep.subr.mxu0 0.0
    %831 = vmatpush1.msra.mxu0 0.0
    %832 = vmatprep.subr.mxu0 0.0
    %833 = vmatpush1.msra.mxu0 0.0
    %834 = vmatprep.subr.mxu0 0.0
    %835 = vmatpush1.msra.mxu0 0.0
    %836 = vmatprep.subr.mxu0 0.0
    %837 = vmatpush1.msra.mxu0 0.0
    %838 = vmatprep.subr.mxu0 0.0
    %839 = vmatpush1.msra.mxu0 0.0
    %840 = vmatprep.subr.mxu0 0.0
    %841 = vmatpush1.msra.mxu0 0.0
    %842 = vmatprep.subr.mxu0 0.0
    %843 = vmatpush1.msra.mxu0 0.0
    %844 = vmatprep.subr.mxu0 0.0
    %845 = vmatpush1.msra.mxu0 0.0
    %846 = vmatprep.subr.mxu0 0.0
    %847 = vmatpush1.msra.mxu0 0.0
    %848 = vmatprep.subr.mxu0 0.0
    %849 = vmatpush1.msra.mxu0 0.0
    %850 = vmatprep.subr.mxu0 0.0
    %851 = vmatpush1.msra.mxu0 0.0
    %852 = vmatprep.subr.mxu0 0.0
    %853 = vmatpush1.msra.mxu0 0.0
    %854 = vmatprep.subr.mxu0 0.0
    %855 = vmatpush1.msra.mxu0 0.0
    %856 = vmatprep.subr.mxu0 0.0
    %857 = vmatpush1.msra.mxu0 0.0
    %858 = vmatprep.subr.mxu0 0.0
    %859 = vmatpush1.msra.mxu0 0.0
    %860 = vmatprep.subr.mxu0 0.0
    %861 = vmatpush1.msra.mxu0 0.0
    %862 = vmatprep.subr.mxu0 0.0
    %863 = vmatpush1.msra.mxu0 0.0
    %864 = vmatprep.subr.mxu0 0.0
    %865 = vmatpush1.msra.mxu0 0.0
    %866 = vmatprep.subr.mxu0 0.0
    %867 = vmatpush1.msra.mxu0 0.0
    %868 = vmatprep.subr.mxu0 0.0
    %869 = vmatpush1.msra.mxu0 0.0
    %870 = vmatprep.subr.mxu0 0.0
    %871 = vmatpush1.msra.mxu0 0.0
    %872 = vmatprep.subr.mxu0 0.0
    %873 = vmatpush1.msra.mxu0 0.0
    %874 = vmatprep.subr.mxu0 0.0
    %875 = vmatpush1.msra.mxu0 0.0
    %876 = vmatprep.subr.mxu0 0.0
    %877 = vmatpush1.msra.mxu0 0.0
    %878 = vmatprep.subr.mxu0 0.0
    %879 = vmatpush1.msra.mxu0 0.0
    %880 = vmatprep.mubr.f32.mxu0 0.0
    %881 = vmatmul.mubr.f32.gmra.mrb[0].mxu0 %v814
    %v882 = vpop.f32.mrb[0].mxu0
    %v883 = vadd.f32 0.0, %v882
    %v884 = vpop.f32.mrb[0].mxu0
    %885 = vdwg.mxu0
    %886 = vrot.lane.b32.xlu0 %v223, 112
    %v887 = vpop.permute.xlu0 %886
    %888 = vrot.lane.b32.xlu0 %v217, 80
    %v889 = vpop.permute.xlu0 %888
    %v890 = vsel %vm228, %v887, 0
    %v892 = vsel %vm228, %v889, 0
    %894 = vmatprep.subr.mxu0 0.0
    %895 = vmatpush1.xpose.msra.mxu0 %v892
    %896 = vmatprep.subr.mxu0 0.0
    %897 = vmatpush1.xpose.msra.mxu0 0.0
    %898 = vmatprep.subr.mxu0 0.0
    %899 = vmatpush1.xpose.msra.mxu0 0.0
    %900 = vmatprep.subr.mxu0 0.0
    %901 = vmatpush1.xpose.msra.mxu0 0.0
    %902 = vmatprep.subr.mxu0 0.0
    %903 = vmatpush1.xpose.msra.mxu0 0.0
    %904 = vmatprep.subr.mxu0 0.0
    %905 = vmatpush1.xpose.msra.mxu0 0.0
    %906 = vmatprep.subr.mxu0 0.0
    %907 = vmatpush1.xpose.msra.mxu0 0.0
    %908 = vmatprep.subr.mxu0 0.0
    %909 = vmatpush1.xpose.msra.mxu0 0.0
    %910 = vmatprep.subr.mxu0 0.0
    %911 = vmatpush1.xpose.msra.mxu0 0.0
    %912 = vmatprep.subr.mxu0 0.0
    %913 = vmatpush1.xpose.msra.mxu0 0.0
    %914 = vmatprep.subr.mxu0 0.0
    %915 = vmatpush1.xpose.msra.mxu0 0.0
    %916 = vmatprep.subr.mxu0 0.0
    %917 = vmatpush1.xpose.msra.mxu0 0.0
    %918 = vmatprep.subr.mxu0 0.0
    %919 = vmatpush1.xpose.msra.mxu0 0.0
    %920 = vmatprep.subr.mxu0 0.0
    %921 = vmatpush1.xpose.msra.mxu0 0.0
    %922 = vmatprep.subr.mxu0 0.0
    %923 = vmatpush1.xpose.msra.mxu0 0.0
    %924 = vmatprep.subr.mxu0 0.0
    %925 = vmatpush1.xpose.msra.mxu0 0.0
    %926 = vmatprep.subr.mxu0 0.0
    %927 = vmatpush1.xpose.msra.mxu0 0.0
    %928 = vmatprep.subr.mxu0 0.0
    %929 = vmatpush1.xpose.msra.mxu0 0.0
    %930 = vmatprep.subr.mxu0 0.0
    %931 = vmatpush1.xpose.msra.mxu0 0.0
    %932 = vmatprep.subr.mxu0 0.0
    %933 = vmatpush1.xpose.msra.mxu0 0.0
    %934 = vmatprep.subr.mxu0 0.0
    %935 = vmatpush1.xpose.msra.mxu0 0.0
    %936 = vmatprep.subr.mxu0 0.0
    %937 = vmatpush1.xpose.msra.mxu0 0.0
    %938 = vmatprep.subr.mxu0 0.0
    %939 = vmatpush1.xpose.msra.mxu0 0.0
    %940 = vmatprep.subr.mxu0 0.0
    %941 = vmatpush1.xpose.msra.mxu0 0.0
    %942 = vmatprep.subr.mxu0 0.0
    %943 = vmatpush1.xpose.msra.mxu0 0.0
    %944 = vmatprep.subr.mxu0 0.0
    %945 = vmatpush1.xpose.msra.mxu0 0.0
    %946 = vmatprep.subr.mxu0 0.0
    %947 = vmatpush1.xpose.msra.mxu0 0.0
    %948 = vmatprep.subr.mxu0 0.0
    %949 = vmatpush1.xpose.msra.mxu0 0.0
    %950 = vmatprep.subr.mxu0 0.0
    %951 = vmatpush1.xpose.msra.mxu0 0.0
    %952 = vmatprep.subr.mxu0 0.0
    %953 = vmatpush1.xpose.msra.mxu0 0.0
    %954 = vmatprep.subr.mxu0 0.0
    %955 = vmatpush1.xpose.msra.mxu0 0.0
    %956 = vmatprep.subr.mxu0 0.0
    %957 = vmatpush1.xpose.msra.mxu0 0.0
    %958 = vmatprep.mubr.f32.mxu0 0.0
    %959 = vmatmul.mubr.f32.gmra.mrb[0].mxu0 %v890
    %v960 = vpop.f32.mrb[0].mxu0
    %v961 = vadd.f32 0.0, %v960
    %v962 = vpop.f32.mrb[0].mxu0
    %963 = vdwg.mxu0
    %964 = vrot.lane.b32.xlu0 %v224, 112
    %v965 = vpop.permute.xlu0 %964
    %966 = vrot.lane.b32.xlu0 %v220, 80
    %v967 = vpop.permute.xlu0 %966
    %v968 = vsel %vm228, %v965, 0
    %v970 = vsel %vm228, %v967, 0
    %972 = vmatprep.subr.mxu0 0.0
    %973 = vmatpush1.xpose.msra.mxu0 %v970
    %974 = vmatprep.subr.mxu0 0.0
    %975 = vmatpush1.xpose.msra.mxu0 0.0
    %976 = vmatprep.subr.mxu0 0.0
    %977 = vmatpush1.xpose.msra.mxu0 0.0
    %978 = vmatprep.subr.mxu0 0.0
    %979 = vmatpush1.xpose.msra.mxu0 0.0
    %980 = vmatprep.subr.mxu0 0.0
    %981 = vmatpush1.xpose.msra.mxu0 0.0
    %982 = vmatprep.subr.mxu0 0.0
    %983 = vmatpush1.xpose.msra.mxu0 0.0
    %984 = vmatprep.subr.mxu0 0.0
    %985 = vmatpush1.xpose.msra.mxu0 0.0
    %986 = vmatprep.subr.mxu0 0.0
    %987 = vmatpush1.xpose.msra.mxu0 0.0
    %988 = vmatprep.subr.mxu0 0.0
    %989 = vmatpush1.xpose.msra.mxu0 0.0
    %990 = vmatprep.subr.mxu0 0.0
    %991 = vmatpush1.xpose.msra.mxu0 0.0
    %992 = vmatprep.subr.mxu0 0.0
    %993 = vmatpush1.xpose.msra.mxu0 0.0
    %994 = vmatprep.subr.mxu0 0.0
    %995 = vmatpush1.xpose.msra.mxu0 0.0
    %996 = vmatprep.subr.mxu0 0.0
    %997 = vmatpush1.xpose.msra.mxu0 0.0
    %998 = vmatprep.subr.mxu0 0.0
    %999 = vmatpush1.xpose.msra.mxu0 0.0
    %1000 = vmatprep.subr.mxu0 0.0
    %1001 = vmatpush1.xpose.msra.mxu0 0.0
    %1002 = vmatprep.subr.mxu0 0.0
    %1003 = vmatpush1.xpose.msra.mxu0 0.0
    %1004 = vmatprep.subr.mxu0 0.0
    %1005 = vmatpush1.xpose.msra.mxu0 0.0
    %1006 = vmatprep.subr.mxu0 0.0
    %1007 = vmatpush1.xpose.msra.mxu0 0.0
    %1008 = vmatprep.subr.mxu0 0.0
    %1009 = vmatpush1.xpose.msra.mxu0 0.0
    %1010 = vmatprep.subr.mxu0 0.0
    %1011 = vmatpush1.xpose.msra.mxu0 0.0
    %1012 = vmatprep.subr.mxu0 0.0
    %1013 = vmatpush1.xpose.msra.mxu0 0.0
    %1014 = vmatprep.subr.mxu0 0.0
    %1015 = vmatpush1.xpose.msra.mxu0 0.0
    %1016 = vmatprep.subr.mxu0 0.0
    %1017 = vmatpush1.xpose.msra.mxu0 0.0
    %1018 = vmatprep.subr.mxu0 0.0
    %1019 = vmatpush1.xpose.msra.mxu0 0.0
    %1020 = vmatprep.subr.mxu0 0.0
    %1021 = vmatpush1.xpose.msra.mxu0 0.0
    %1022 = vmatprep.subr.mxu0 0.0
    %1023 = vmatpush1.xpose.msra.mxu0 0.0
    %1024 = vmatprep.subr.mxu0 0.0
    %1025 = vmatpush1.xpose.msra.mxu0 0.0
    %1026 = vmatprep.subr.mxu0 0.0
    %1027 = vmatpush1.xpose.msra.mxu0 0.0
    %1028 = vmatprep.subr.mxu0 0.0
    %1029 = vmatpush1.xpose.msra.mxu0 0.0
    %1030 = vmatprep.subr.mxu0 0.0
    %1031 = vmatpush1.xpose.msra.mxu0 0.0
    %1032 = vmatprep.subr.mxu0 0.0
    %1033 = vmatpush1.xpose.msra.mxu0 0.0
    %1034 = vmatprep.subr.mxu0 0.0
    %1035 = vmatpush1.xpose.msra.mxu0 0.0
    %1036 = vmatprep.mubr.f32.mxu0 0.0
    %1037 = vmatmul.mubr.f32.gmra.mrb[0].mxu0 %v968
    %v1038 = vpop.f32.mrb[0].mxu0
    %v1039 = vadd.f32 0.0, %v1038
    %v1040 = vpop.f32.mrb[0].mxu0
    %1041 = vdwg.mxu0
    %v1042 = vsel %vm228, %v961, -inf
    %1043 = vmax.xlane.f32.xlu0 %v1042
    %v1044 = vpop.xlane.xlu0 %1043
    %v1045 = vsel %vm228, %v1039, -inf
    %1046 = vmax.xlane.f32.xlu0 %v1045
    %v1047 = vpop.xlane.xlu0 %1046
    %v1048 = vsub.f32 %v961, %v1044
    %v1049 = vsub.f32 %v1039, %v1047
    %v1050 = vmul.f32 %v1048, 1.442695
    %v1051 = vpow.pop %v1050
    %v1052 = vmul.f32 %v1049, 1.442695
    %v1053 = vpow.pop %v1052
    %v1054 = vsel %vm228, %v1051, 0.0
    %1055 = vadd.xlane.f32.xlu0 %v1054
    %v1056 = vpop.xlane.xlu0 %1055
    %v1057 = vsel %vm228, %v1053, 0.0
    %1058 = vadd.xlane.f32.xlu0 %v1057
    %v1059 = vpop.xlane.xlu0 %1058
    %v1060 = vrcp.pop %v1056
    %v1061 = vrcp.pop %v1059
    %v1062 = vmul.f32 %v1051, %v1060
    %v1063 = vmul.f32 %v1053, %v1061
    %1064 = vrot.lane.b32.xlu0 %v217, 48
    %v1065 = vpop.permute.xlu0 %1064
    %v1068 = vsel %vm228, %v1062, 0
    %1070 = vmatprep.subr.mxu0 0.0
    %1071 = vmatpush1.msra.mxu0 %v1065
    %1072 = vmatprep.subr.mxu0 0.0
    %1073 = vmatpush1.msra.mxu0 0.0
    %1074 = vmatprep.subr.mxu0 0.0
    %1075 = vmatpush1.msra.mxu0 0.0
    %1076 = vmatprep.subr.mxu0 0.0
    %1077 = vmatpush1.msra.mxu0 0.0
    %1078 = vmatprep.subr.mxu0 0.0
    %1079 = vmatpush1.msra.mxu0 0.0
    %1080 = vmatprep.subr.mxu0 0.0
    %1081 = vmatpush1.msra.mxu0 0.0
    %1082 = vmatprep.subr.mxu0 0.0
    %1083 = vmatpush1.msra.mxu0 0.0
    %1084 = vmatprep.subr.mxu0 0.0
    %1085 = vmatpush1.msra.mxu0 0.0
    %1086 = vmatprep.subr.mxu0 0.0
    %1087 = vmatpush1.msra.mxu0 0.0
    %1088 = vmatprep.subr.mxu0 0.0
    %1089 = vmatpush1.msra.mxu0 0.0
    %1090 = vmatprep.subr.mxu0 0.0
    %1091 = vmatpush1.msra.mxu0 0.0
    %1092 = vmatprep.subr.mxu0 0.0
    %1093 = vmatpush1.msra.mxu0 0.0
    %1094 = vmatprep.subr.mxu0 0.0
    %1095 = vmatpush1.msra.mxu0 0.0
    %1096 = vmatprep.subr.mxu0 0.0
    %1097 = vmatpush1.msra.mxu0 0.0
    %1098 = vmatprep.subr.mxu0 0.0
    %1099 = vmatpush1.msra.mxu0 0.0
    %1100 = vmatprep.subr.mxu0 0.0
    %1101 = vmatpush1.msra.mxu0 0.0
    %1102 = vmatprep.subr.mxu0 0.0
    %1103 = vmatpush1.msra.mxu0 0.0
    %1104 = vmatprep.subr.mxu0 0.0
    %1105 = vmatpush1.msra.mxu0 0.0
    %1106 = vmatprep.subr.mxu0 0.0
    %1107 = vmatpush1.msra.mxu0 0.0
    %1108 = vmatprep.subr.mxu0 0.0
    %1109 = vmatpush1.msra.mxu0 0.0
    %1110 = vmatprep.subr.mxu0 0.0
    %1111 = vmatpush1.msra.mxu0 0.0
    %1112 = vmatprep.subr.mxu0 0.0
    %1113 = vmatpush1.msra.mxu0 0.0
    %1114 = vmatprep.subr.mxu0 0.0
    %1115 = vmatpush1.msra.mxu0 0.0
    %1116 = vmatprep.subr.mxu0 0.0
    %1117 = vmatpush1.msra.mxu0 0.0
    %1118 = vmatprep.subr.mxu0 0.0
    %1119 = vmatpush1.msra.mxu0 0.0
    %1120 = vmatprep.subr.mxu0 0.0
    %1121 = vmatpush1.msra.mxu0 0.0
    %1122 = vmatprep.subr.mxu0 0.0
    %1123 = vmatpush1.msra.mxu0 0.0
    %1124 = vmatprep.subr.mxu0 0.0
    %1125 = vmatpush1.msra.mxu0 0.0
    %1126 = vmatprep.subr.mxu0 0.0
    %1127 = vmatpush1.msra.mxu0 0.0
    %1128 = vmatprep.subr.mxu0 0.0
    %1129 = vmatpush1.msra.mxu0 0.0
    %1130 = vmatprep.subr.mxu0 0.0
    %1131 = vmatpush1.msra.mxu0 0.0
    %1132 = vmatprep.subr.mxu0 0.0
    %1133 = vmatpush1.msra.mxu0 0.0
    %1134 = vmatprep.mubr.f32.mxu0 0.0
    %1135 = vmatmul.mubr.f32.gmra.mrb[0].mxu0 %v1068
    %v1136 = vpop.f32.mrb[0].mxu0
    %v1137 = vadd.f32 0.0, %v1136
    %v1138 = vpop.f32.mrb[0].mxu0
    %1139 = vdwg.mxu0
    %1140 = vrot.lane.b32.xlu0 %v220, 48
    %v1141 = vpop.permute.xlu0 %1140
    %v1144 = vsel %vm228, %v1063, 0
    %1146 = vmatprep.subr.mxu0 0.0
    %1147 = vmatpush1.msra.mxu0 %v1141
    %1148 = vmatprep.subr.mxu0 0.0
    %1149 = vmatpush1.msra.mxu0 0.0
    %1150 = vmatprep.subr.mxu0 0.0
    %1151 = vmatpush1.msra.mxu0 0.0
    %1152 = vmatprep.subr.mxu0 0.0
    %1153 = vmatpush1.msra.mxu0 0.0
    %1154 = vmatprep.subr.mxu0 0.0
    %1155 = vmatpush1.msra.mxu0 0.0
    %1156 = vmatprep.subr.mxu0 0.0
    %1157 = vmatpush1.msra.mxu0 0.0
    %1158 = vmatprep.subr.mxu0 0.0
    %1159 = vmatpush1.msra.mxu0 0.0
    %1160 = vmatprep.subr.mxu0 0.0
    %1161 = vmatpush1.msra.mxu0 0.0
    %1162 = vmatprep.subr.mxu0 0.0
    %1163 = vmatpush1.msra.mxu0 0.0
    %1164 = vmatprep.subr.mxu0 0.0
    %1165 = vmatpush1.msra.mxu0 0.0
    %1166 = vmatprep.subr.mxu0 0.0
    %1167 = vmatpush1.msra.mxu0 0.0
    %1168 = vmatprep.subr.mxu0 0.0
    %1169 = vmatpush1.msra.mxu0 0.0
    %1170 = vmatprep.subr.mxu0 0.0
    %1171 = vmatpush1.msra.mxu0 0.0
    %1172 = vmatprep.subr.mxu0 0.0
    %1173 = vmatpush1.msra.mxu0 0.0
    %1174 = vmatprep.subr.mxu0 0.0
    %1175 = vmatpush1.msra.mxu0 0.0
    %1176 = vmatprep.subr.mxu0 0.0
    %1177 = vmatpush1.msra.mxu0 0.0
    %1178 = vmatprep.subr.mxu0 0.0
    %1179 = vmatpush1.msra.mxu0 0.0
    %1180 = vmatprep.subr.mxu0 0.0
    %1181 = vmatpush1.msra.mxu0 0.0
    %1182 = vmatprep.subr.mxu0 0.0
    %1183 = vmatpush1.msra.mxu0 0.0
    %1184 = vmatprep.subr.mxu0 0.0
    %1185 = vmatpush1.msra.mxu0 0.0
    %1186 = vmatprep.subr.mxu0 0.0
    %1187 = vmatpush1.msra.mxu0 0.0
    %1188 = vmatprep.subr.mxu0 0.0
    %1189 = vmatpush1.msra.mxu0 0.0
    %1190 = vmatprep.subr.mxu0 0.0
    %1191 = vmatpush1.msra.mxu0 0.0
    %1192 = vmatprep.subr.mxu0 0.0
    %1193 = vmatpush1.msra.mxu0 0.0
    %1194 = vmatprep.subr.mxu0 0.0
    %1195 = vmatpush1.msra.mxu0 0.0
    %1196 = vmatprep.subr.mxu0 0.0
    %1197 = vmatpush1.msra.mxu0 0.0
    %1198 = vmatprep.subr.mxu0 0.0
    %1199 = vmatpush1.msra.mxu0 0.0
    %1200 = vmatprep.subr.mxu0 0.0
    %1201 = vmatpush1.msra.mxu0 0.0
    %1202 = vmatprep.subr.mxu0 0.0
    %1203 = vmatpush1.msra.mxu0 0.0
    %1204 = vmatprep.subr.mxu0 0.0
    %1205 = vmatpush1.msra.mxu0 0.0
    %1206 = vmatprep.subr.mxu0 0.0
    %1207 = vmatpush1.msra.mxu0 0.0
    %1208 = vmatprep.subr.mxu0 0.0
    %1209 = vmatpush1.msra.mxu0 0.0
    %1210 = vmatprep.mubr.f32.mxu0 0.0
    %1211 = vmatmul.mubr.f32.gmra.mrb[0].mxu0 %v1144
    %v1212 = vpop.f32.mrb[0].mxu0
    %v1213 = vadd.f32 0.0, %v1212
    %v1214 = vpop.f32.mrb[0].mxu0
    %1215 = vdwg.mxu0
    %1216 = vrot.lane.b32.xlu0 %v223, 104
    %v1217 = vpop.permute.xlu0 %1216
    %1218 = vrot.lane.b32.xlu0 %v217, 72
    %v1219 = vpop.permute.xlu0 %1218
    %v1220 = vsel %vm228, %v1217, 0
    %v1222 = vsel %vm228, %v1219, 0
    %1224 = vmatprep.subr.mxu0 0.0
    %1225 = vmatpush1.xpose.msra.mxu0 %v1222
    %1226 = vmatprep.subr.mxu0 0.0
    %1227 = vmatpush1.xpose.msra.mxu0 0.0
    %1228 = vmatprep.subr.mxu0 0.0
    %1229 = vmatpush1.xpose.msra.mxu0 0.0
    %1230 = vmatprep.subr.mxu0 0.0
    %1231 = vmatpush1.xpose.msra.mxu0 0.0
    %1232 = vmatprep.subr.mxu0 0.0
    %1233 = vmatpush1.xpose.msra.mxu0 0.0
    %1234 = vmatprep.subr.mxu0 0.0
    %1235 = vmatpush1.xpose.msra.mxu0 0.0
    %1236 = vmatprep.subr.mxu0 0.0
    %1237 = vmatpush1.xpose.msra.mxu0 0.0
    %1238 = vmatprep.subr.mxu0 0.0
    %1239 = vmatpush1.xpose.msra.mxu0 0.0
    %1240 = vmatprep.subr.mxu0 0.0
    %1241 = vmatpush1.xpose.msra.mxu0 0.0
    %1242 = vmatprep.subr.mxu0 0.0
    %1243 = vmatpush1.xpose.msra.mxu0 0.0
    %1244 = vmatprep.subr.mxu0 0.0
    %1245 = vmatpush1.xpose.msra.mxu0 0.0
    %1246 = vmatprep.subr.mxu0 0.0
    %1247 = vmatpush1.xpose.msra.mxu0 0.0
    %1248 = vmatprep.subr.mxu0 0.0
    %1249 = vmatpush1.xpose.msra.mxu0 0.0
    %1250 = vmatprep.subr.mxu0 0.0
    %1251 = vmatpush1.xpose.msra.mxu0 0.0
    %1252 = vmatprep.subr.mxu0 0.0
    %1253 = vmatpush1.xpose.msra.mxu0 0.0
    %1254 = vmatprep.subr.mxu0 0.0
    %1255 = vmatpush1.xpose.msra.mxu0 0.0
    %1256 = vmatprep.subr.mxu0 0.0
    %1257 = vmatpush1.xpose.msra.mxu0 0.0
    %1258 = vmatprep.subr.mxu0 0.0
    %1259 = vmatpush1.xpose.msra.mxu0 0.0
    %1260 = vmatprep.subr.mxu0 0.0
    %1261 = vmatpush1.xpose.msra.mxu0 0.0
    %1262 = vmatprep.subr.mxu0 0.0
    %1263 = vmatpush1.xpose.msra.mxu0 0.0
    %1264 = vmatprep.subr.mxu0 0.0
    %1265 = vmatpush1.xpose.msra.mxu0 0.0
    %1266 = vmatprep.subr.mxu0 0.0
    %1267 = vmatpush1.xpose.msra.mxu0 0.0
    %1268 = vmatprep.subr.mxu0 0.0
    %1269 = vmatpush1.xpose.msra.mxu0 0.0
    %1270 = vmatprep.subr.mxu0 0.0
    %1271 = vmatpush1.xpose.msra.mxu0 0.0
    %1272 = vmatprep.subr.mxu0 0.0
    %1273 = vmatpush1.xpose.msra.mxu0 0.0
    %1274 = vmatprep.subr.mxu0 0.0
    %1275 = vmatpush1.xpose.msra.mxu0 0.0
    %1276 = vmatprep.subr.mxu0 0.0
    %1277 = vmatpush1.xpose.msra.mxu0 0.0
    %1278 = vmatprep.subr.mxu0 0.0
    %1279 = vmatpush1.xpose.msra.mxu0 0.0
    %1280 = vmatprep.subr.mxu0 0.0
    %1281 = vmatpush1.xpose.msra.mxu0 0.0
    %1282 = vmatprep.subr.mxu0 0.0
    %1283 = vmatpush1.xpose.msra.mxu0 0.0
    %1284 = vmatprep.subr.mxu0 0.0
    %1285 = vmatpush1.xpose.msra.mxu0 0.0
    %1286 = vmatprep.subr.mxu0 0.0
    %1287 = vmatpush1.xpose.msra.mxu0 0.0
    %1288 = vmatprep.mubr.f32.mxu0 0.0
    %1289 = vmatmul.mubr.f32.gmra.mrb[0].mxu0 %v1220
    %v1290 = vpop.f32.mrb[0].mxu0
    %v1291 = vadd.f32 0.0, %v1290
    %v1292 = vpop.f32.mrb[0].mxu0
    %1293 = vdwg.mxu0
    %1294 = vrot.lane.b32.xlu0 %v224, 104
    %v1295 = vpop.permute.xlu0 %1294
    %1296 = vrot.lane.b32.xlu0 %v220, 72
    %v1297 = vpop.permute.xlu0 %1296
    %v1298 = vsel %vm228, %v1295, 0
    %v1300 = vsel %vm228, %v1297, 0
    %1302 = vmatprep.subr.mxu0 0.0
    %1303 = vmatpush1.xpose.msra.mxu0 %v1300
    %1304 = vmatprep.subr.mxu0 0.0
    %1305 = vmatpush1.xpose.msra.mxu0 0.0
    %1306 = vmatprep.subr.mxu0 0.0
    %1307 = vmatpush1.xpose.msra.mxu0 0.0
    %1308 = vmatprep.subr.mxu0 0.0
    %1309 = vmatpush1.xpose.msra.mxu0 0.0
    %1310 = vmatprep.subr.mxu0 0.0
    %1311 = vmatpush1.xpose.msra.mxu0 0.0
    %1312 = vmatprep.subr.mxu0 0.0
    %1313 = vmatpush1.xpose.msra.mxu0 0.0
    %1314 = vmatprep.subr.mxu0 0.0
    %1315 = vmatpush1.xpose.msra.mxu0 0.0
    %1316 = vmatprep.subr.mxu0 0.0
    %1317 = vmatpush1.xpose.msra.mxu0 0.0
    %1318 = vmatprep.subr.mxu0 0.0
    %1319 = vmatpush1.xpose.msra.mxu0 0.0
    %1320 = vmatprep.subr.mxu0 0.0
    %1321 = vmatpush1.xpose.msra.mxu0 0.0
    %1322 = vmatprep.subr.mxu0 0.0
    %1323 = vmatpush1.xpose.msra.mxu0 0.0
    %1324 = vmatprep.subr.mxu0 0.0
    %1325 = vmatpush1.xpose.msra.mxu0 0.0
    %1326 = vmatprep.subr.mxu0 0.0
    %1327 = vmatpush1.xpose.msra.mxu0 0.0
    %1328 = vmatprep.subr.mxu0 0.0
    %1329 = vmatpush1.xpose.msra.mxu0 0.0
    %1330 = vmatprep.subr.mxu0 0.0
    %1331 = vmatpush1.xpose.msra.mxu0 0.0
    %1332 = vmatprep.subr.mxu0 0.0
    %1333 = vmatpush1.xpose.msra.mxu0 0.0
    %1334 = vmatprep.subr.mxu0 0.0
    %1335 = vmatpush1.xpose.msra.mxu0 0.0
    %1336 = vmatprep.subr.mxu0 0.0
    %1337 = vmatpush1.xpose.msra.mxu0 0.0
    %1338 = vmatprep.subr.mxu0 0.0
    %1339 = vmatpush1.xpose.msra.mxu0 0.0
    %1340 = vmatprep.subr.mxu0 0.0
    %1341 = vmatpush1.xpose.msra.mxu0 0.0
    %1342 = vmatprep.subr.mxu0 0.0
    %1343 = vmatpush1.xpose.msra.mxu0 0.0
    %1344 = vmatprep.subr.mxu0 0.0
    %1345 = vmatpush1.xpose.msra.mxu0 0.0
    %1346 = vmatprep.subr.mxu0 0.0
    %1347 = vmatpush1.xpose.msra.mxu0 0.0
    %1348 = vmatprep.subr.mxu0 0.0
    %1349 = vmatpush1.xpose.msra.mxu0 0.0
    %1350 = vmatprep.subr.mxu0 0.0
    %1351 = vmatpush1.xpose.msra.mxu0 0.0
    %1352 = vmatprep.subr.mxu0 0.0
    %1353 = vmatpush1.xpose.msra.mxu0 0.0
    %1354 = vmatprep.subr.mxu0 0.0
    %1355 = vmatpush1.xpose.msra.mxu0 0.0
    %1356 = vmatprep.subr.mxu0 0.0
    %1357 = vmatpush1.xpose.msra.mxu0 0.0
    %1358 = vmatprep.subr.mxu0 0.0
    %1359 = vmatpush1.xpose.msra.mxu0 0.0
    %1360 = vmatprep.subr.mxu0 0.0
    %1361 = vmatpush1.xpose.msra.mxu0 0.0
    %1362 = vmatprep.subr.mxu0 0.0
    %1363 = vmatpush1.xpose.msra.mxu0 0.0
    %1364 = vmatprep.subr.mxu0 0.0
    %1365 = vmatpush1.xpose.msra.mxu0 0.0
    %1366 = vmatprep.mubr.f32.mxu0 0.0
    %1367 = vmatmul.mubr.f32.gmra.mrb[0].mxu0 %v1298
    %v1368 = vpop.f32.mrb[0].mxu0
    %v1369 = vadd.f32 0.0, %v1368
    %v1370 = vpop.f32.mrb[0].mxu0
    %1371 = vdwg.mxu0
    %v1372 = vsel %vm228, %v1291, -inf
    %1373 = vmax.xlane.f32.xlu0 %v1372
    %v1374 = vpop.xlane.xlu0 %1373
    %v1375 = vsel %vm228, %v1369, -inf
    %1376 = vmax.xlane.f32.xlu0 %v1375
    %v1377 = vpop.xlane.xlu0 %1376
    %v1378 = vsub.f32 %v1291, %v1374
    %v1379 = vsub.f32 %v1369, %v1377
    %v1380 = vmul.f32 %v1378, 1.442695
    %v1381 = vpow.pop %v1380
    %v1382 = vmul.f32 %v1379, 1.442695
    %v1383 = vpow.pop %v1382
    %v1384 = vsel %vm228, %v1381, 0.0
    %1385 = vadd.xlane.f32.xlu0 %v1384
    %v1386 = vpop.xlane.xlu0 %1385
    %v1387 = vsel %vm228, %v1383, 0.0
    %1388 = vadd.xlane.f32.xlu0 %v1387
    %v1389 = vpop.xlane.xlu0 %1388
    %v1390 = vrcp.pop %v1386
    %v1391 = vrcp.pop %v1389
    %v1392 = vmul.f32 %v1381, %v1390
    %v1393 = vmul.f32 %v1383, %v1391
    %1394 = vrot.lane.b32.xlu0 %v217, 40
    %v1395 = vpop.permute.xlu0 %1394
    %v1398 = vsel %vm228, %v1392, 0
    %1400 = vmatprep.subr.mxu0 0.0
    %1401 = vmatpush1.msra.mxu0 %v1395
    %1402 = vmatprep.subr.mxu0 0.0
    %1403 = vmatpush1.msra.mxu0 0.0
    %1404 = vmatprep.subr.mxu0 0.0
    %1405 = vmatpush1.msra.mxu0 0.0
    %1406 = vmatprep.subr.mxu0 0.0
    %1407 = vmatpush1.msra.mxu0 0.0
    %1408 = vmatprep.subr.mxu0 0.0
    %1409 = vmatpush1.msra.mxu0 0.0
    %1410 = vmatprep.subr.mxu0 0.0
    %1411 = vmatpush1.msra.mxu0 0.0
    %1412 = vmatprep.subr.mxu0 0.0
    %1413 = vmatpush1.msra.mxu0 0.0
    %1414 = vmatprep.subr.mxu0 0.0
    %1415 = vmatpush1.msra.mxu0 0.0
    %1416 = vmatprep.subr.mxu0 0.0
    %1417 = vmatpush1.msra.mxu0 0.0
    %1418 = vmatprep.subr.mxu0 0.0
    %1419 = vmatpush1.msra.mxu0 0.0
    %1420 = vmatprep.subr.mxu0 0.0
    %1421 = vmatpush1.msra.mxu0 0.0
    %1422 = vmatprep.subr.mxu0 0.0
    %1423 = vmatpush1.msra.mxu0 0.0
    %1424 = vmatprep.subr.mxu0 0.0
    %1425 = vmatpush1.msra.mxu0 0.0
    %1426 = vmatprep.subr.mxu0 0.0
    %1427 = vmatpush1.msra.mxu0 0.0
    %1428 = vmatprep.subr.mxu0 0.0
    %1429 = vmatpush1.msra.mxu0 0.0
    %1430 = vmatprep.subr.mxu0 0.0
    %1431 = vmatpush1.msra.mxu0 0.0
    %1432 = vmatprep.subr.mxu0 0.0
    %1433 = vmatpush1.msra.mxu0 0.0
    %1434 = vmatprep.subr.mxu0 0.0
    %1435 = vmatpush1.msra.mxu0 0.0
    %1436 = vmatprep.subr.mxu0 0.0
    %1437 = vmatpush1.msra.mxu0 0.0
    %1438 = vmatprep.subr.mxu0 0.0
    %1439 = vmatpush1.msra.mxu0 0.0
    %1440 = vmatprep.subr.mxu0 0.0
    %1441 = vmatpush1.msra.mxu0 0.0
    %1442 = vmatprep.subr.mxu0 0.0
    %1443 = vmatpush1.msra.mxu0 0.0
    %1444 = vmatprep.subr.mxu0 0.0
    %1445 = vmatpush1.msra.mxu0 0.0
    %1446 = vmatprep.subr.mxu0 0.0
    %1447 = vmatpush1.msra.mxu0 0.0
    %1448 = vmatprep.subr.mxu0 0.0
    %1449 = vmatpush1.msra.mxu0 0.0
    %1450 = vmatprep.subr.mxu0 0.0
    %1451 = vmatpush1.msra.mxu0 0.0
    %1452 = vmatprep.subr.mxu0 0.0
    %1453 = vmatpush1.msra.mxu0 0.0
    %1454 = vmatprep.subr.mxu0 0.0
    %1455 = vmatpush1.msra.mxu0 0.0
    %1456 = vmatprep.subr.mxu0 0.0
    %1457 = vmatpush1.msra.mxu0 0.0
    %1458 = vmatprep.subr.mxu0 0.0
    %1459 = vmatpush1.msra.mxu0 0.0
    %1460 = vmatprep.subr.mxu0 0.0
    %1461 = vmatpush1.msra.mxu0 0.0
    %1462 = vmatprep.subr.mxu0 0.0
    %1463 = vmatpush1.msra.mxu0 0.0
    %1464 = vmatprep.mubr.f32.mxu0 0.0
    %1465 = vmatmul.mubr.f32.gmra.mrb[0].mxu0 %v1398
    %v1466 = vpop.f32.mrb[0].mxu0
    %v1467 = vadd.f32 0.0, %v1466
    %v1468 = vpop.f32.mrb[0].mxu0
    %1469 = vdwg.mxu0
    %1470 = vrot.lane.b32.xlu0 %v220, 40
    %v1471 = vpop.permute.xlu0 %1470
    %v1474 = vsel %vm228, %v1393, 0
    %1476 = vmatprep.subr.mxu0 0.0
    %1477 = vmatpush1.msra.mxu0 %v1471
    %1478 = vmatprep.subr.mxu0 0.0
    %1479 = vmatpush1.msra.mxu0 0.0
    %1480 = vmatprep.subr.mxu0 0.0
    %1481 = vmatpush1.msra.mxu0 0.0
    %1482 = vmatprep.subr.mxu0 0.0
    %1483 = vmatpush1.msra.mxu0 0.0
    %1484 = vmatprep.subr.mxu0 0.0
    %1485 = vmatpush1.msra.mxu0 0.0
    %1486 = vmatprep.subr.mxu0 0.0
    %1487 = vmatpush1.msra.mxu0 0.0
    %1488 = vmatprep.subr.mxu0 0.0
    %1489 = vmatpush1.msra.mxu0 0.0
    %1490 = vmatprep.subr.mxu0 0.0
    %1491 = vmatpush1.msra.mxu0 0.0
    %1492 = vmatprep.subr.mxu0 0.0
    %1493 = vmatpush1.msra.mxu0 0.0
    %1494 = vmatprep.subr.mxu0 0.0
    %1495 = vmatpush1.msra.mxu0 0.0
    %1496 = vmatprep.subr.mxu0 0.0
    %1497 = vmatpush1.msra.mxu0 0.0
    %1498 = vmatprep.subr.mxu0 0.0
    %1499 = vmatpush1.msra.mxu0 0.0
    %1500 = vmatprep.subr.mxu0 0.0
    %1501 = vmatpush1.msra.mxu0 0.0
    %1502 = vmatprep.subr.mxu0 0.0
    %1503 = vmatpush1.msra.mxu0 0.0
    %1504 = vmatprep.subr.mxu0 0.0
    %1505 = vmatpush1.msra.mxu0 0.0
    %1506 = vmatprep.subr.mxu0 0.0
    %1507 = vmatpush1.msra.mxu0 0.0
    %1508 = vmatprep.subr.mxu0 0.0
    %1509 = vmatpush1.msra.mxu0 0.0
    %1510 = vmatprep.subr.mxu0 0.0
    %1511 = vmatpush1.msra.mxu0 0.0
    %1512 = vmatprep.subr.mxu0 0.0
    %1513 = vmatpush1.msra.mxu0 0.0
    %1514 = vmatprep.subr.mxu0 0.0
    %1515 = vmatpush1.msra.mxu0 0.0
    %1516 = vmatprep.subr.mxu0 0.0
    %1517 = vmatpush1.msra.mxu0 0.0
    %1518 = vmatprep.subr.mxu0 0.0
    %1519 = vmatpush1.msra.mxu0 0.0
    %1520 = vmatprep.subr.mxu0 0.0
    %1521 = vmatpush1.msra.mxu0 0.0
    %1522 = vmatprep.subr.mxu0 0.0
    %1523 = vmatpush1.msra.mxu0 0.0
    %1524 = vmatprep.subr.mxu0 0.0
    %1525 = vmatpush1.msra.mxu0 0.0
    %1526 = vmatprep.subr.mxu0 0.0
    %1527 = vmatpush1.msra.mxu0 0.0
    %1528 = vmatprep.subr.mxu0 0.0
    %1529 = vmatpush1.msra.mxu0 0.0
    %1530 = vmatprep.subr.mxu0 0.0
    %1531 = vmatpush1.msra.mxu0 0.0
    %1532 = vmatprep.subr.mxu0 0.0
    %1533 = vmatpush1.msra.mxu0 0.0
    %1534 = vmatprep.subr.mxu0 0.0
    %1535 = vmatpush1.msra.mxu0 0.0
    %1536 = vmatprep.subr.mxu0 0.0
    %1537 = vmatpush1.msra.mxu0 0.0
    %1538 = vmatprep.subr.mxu0 0.0
    %1539 = vmatpush1.msra.mxu0 0.0
    %1540 = vmatprep.mubr.f32.mxu0 0.0
    %1541 = vmatmul.mubr.f32.gmra.mrb[0].mxu0 %v1474
    %v1542 = vpop.f32.mrb[0].mxu0
    %v1543 = vadd.f32 0.0, %v1542
    %v1544 = vpop.f32.mrb[0].mxu0
    %1545 = vdwg.mxu0
    %1548 = vrot.lane.b32.xlu0 %v807, 8
    %v1549 = vpop.permute.xlu0 %1548
    %1550 = vrot.lane.b32.xlu0 %v883, 8
    %v1551 = vpop.permute.xlu0 %1550
    %1556 = vrot.lane.b32.xlu0 %v1137, 16
    %v1557 = vpop.permute.xlu0 %1556
    %1558 = vrot.lane.b32.xlu0 %v1213, 16
    %v1559 = vpop.permute.xlu0 %1558
    %1564 = vrot.lane.b32.xlu0 %v1467, 24
    %v1565 = vpop.permute.xlu0 %1564
    %1566 = vrot.lane.b32.xlu0 %v1543, 24
    %v1567 = vpop.permute.xlu0 %1566
    %v1570 = vsel %vm228, %v477, %v1549
    %v1571 = vsel %vm228, %v553, %v1551
    %vm1572 = vcmask 130048
    %v1573 = vsel %vm1572, %v1570, %v1557
    %v1574 = vsel %vm1572, %v1571, %v1559
    %vm1575 = vcmask 195584
    %v1576 = vsel %vm1575, %v1573, %v1565
    %v1577 = vsel %vm1575, %v1574, %v1567
    %v1578 = vpack.c.bf16 %v1577, %v1576
    %v1579 = vld [vmem:[%s3] sm:$0xf]
    %v1580 = vld [vmem:[%s3 + $0x4] sm:$0xf]
    %v1581 = vld [vmem:[%s3 + $0x8] sm:$0xf]
    %v1582 = vld [vmem:[%s3 + $0xc] sm:$0xf]
    %v1583 = vlaneseq
    %v1584 = vshrl.u32 %v1583, 7
    %v1585 = vsub.s32 2, %v1584
    %v1586 = vrot.slane %v34, %v1585
    %v1591 = vunpack.c.l.b16 %v1579
    %v1592 = vunpack.c.l.b16 %v1580
    %v1593 = vunpack.c.l.b16 %v1581
    %v1594 = vunpack.c.l.b16 %v1582
    %v1595 = vpack.c.b16 %v1592, %v1591
    %v1596 = vpack.c.b16 %v1594, %v1593
    %v1600 = vsel %vm115, %v1578, 0
    %1602 = vmatprep.subr.bf16.mxu0 0
    %1603 = vmatpush1.bf16.msra.mxu0 %v1595
    %1604 = vmatprep.subr.bf16.mxu0 0
    %1605 = vmatpush1.bf16.msra.mxu0 %v1596
    %1606 = vmatprep.subr.bf16.mxu0 0
    %1607 = vmatpush1.bf16.msra.mxu0 0
    %1608 = vmatprep.subr.bf16.mxu0 0
    %1609 = vmatpush1.bf16.msra.mxu0 0
    %1610 = vmatprep.subr.bf16.mxu0 0
    %1611 = vmatpush1.bf16.msra.mxu0 0
    %1612 = vmatprep.subr.bf16.mxu0 0
    %1613 = vmatpush1.bf16.msra.mxu0 0
    %1614 = vmatprep.subr.bf16.mxu0 0
    %1615 = vmatpush1.bf16.msra.mxu0 0
    %1616 = vmatprep.subr.bf16.mxu0 0
    %1617 = vmatpush1.bf16.msra.mxu0 0
    %1618 = vmatprep.subr.bf16.mxu0 0
    %1619 = vmatpush1.bf16.msra.mxu0 0
    %1620 = vmatprep.subr.bf16.mxu0 0
    %1621 = vmatpush1.bf16.msra.mxu0 0
    %1622 = vmatprep.subr.bf16.mxu0 0
    %1623 = vmatpush1.bf16.msra.mxu0 0
    %1624 = vmatprep.subr.bf16.mxu0 0
    %1625 = vmatpush1.bf16.msra.mxu0 0
    %1626 = vmatprep.subr.bf16.mxu0 0
    %1627 = vmatpush1.bf16.msra.mxu0 0
    %1628 = vmatprep.subr.bf16.mxu0 0
    %1629 = vmatpush1.bf16.msra.mxu0 0
    %1630 = vmatprep.subr.bf16.mxu0 0
    %1631 = vmatpush1.bf16.msra.mxu0 0
    %1632 = vmatprep.subr.bf16.mxu0 0
    %1633 = vmatpush1.bf16.msra.mxu0 0
    %1634 = vmatprep.mubr.bf16.mxu0 0
    %1635 = vmatmul.mubr.bf16.gmra.mrb[0].mxu0 %v1600
    %v1636 = vpop.f32.mrb[0].mxu0
    %v1637 = vadd.f32 %v1586, %v1636
    %v1638 = vpop.f32.mrb[0].mxu0
    %v1639 = vpop.f32.mrb[0].mxu0
    %v1640 = vadd.f32 %v1586, %v1639
    %v1641 = vpop.f32.mrb[0].mxu0
    %1642 = vdwg.mxu0
    %v1643 = vadd.f32 %v153, %v1637
    %v1644 = vadd.f32 %v154, %v1640
    %v1645 = vsel %vm115, %v1643, 0.0
    %1646 = vadd.xlane.f32.xlu0 %v1645
    %v1647 = vpop.xlane.xlu0 %1646
    %v1648 = vsel %vm115, %v1644, 0.0
    %1649 = vadd.xlane.f32.xlu0 %v1648
    %v1650 = vpop.xlane.xlu0 %1649
    %v1651 = vmul.f32 %v1647, %v122
    %v1652 = vmul.f32 %v1650, %v122
    %v1653 = vsub.f32 %v1643, %v1651
    %v1654 = vsub.f32 %v1644, %v1652
    %v1655 = vmul.f32 %v1653, %v1653
    %v1656 = vmul.f32 %v1654, %v1654
    %v1657 = vsel %vm115, %v1655, 0.0
    %1658 = vadd.xlane.f32.xlu0 %v1657
    %v1659 = vpop.xlane.xlu0 %1658
    %v1660 = vsel %vm115, %v1656, 0.0
    %1661 = vadd.xlane.f32.xlu0 %v1660
    %v1662 = vpop.xlane.xlu0 %1661
    %v1663 = vmul.f32 %v1659, %v122
    %v1664 = vmul.f32 %v1662, %v122
    %v1665 = vadd.f32 %v1663, 1e-05
    %v1666 = vadd.f32 %v1664, 1e-05
    %v1667 = vrsqrt.pop %v1665
    %v1668 = vrsqrt.pop %v1666
    %v1669 = vmul.f32 %v1653, %v1667
    %v1670 = vmul.f32 %v1654, %v1668
    %v1671 = vlaneseq
    %v1672 = vshrl.u32 %v1671, 7
    %v1673 = vsub.s32 3, %v1672
    %v1674 = vrot.slane %v34, %v1673
    %v1675 = vmul.f32 %v1669, %v1674
    %v1676 = vmul.f32 %v1670, %v1674
    %v1677 = vlaneseq
    %v1678 = vshrl.u32 %v1677, 7
    %v1679 = vsub.s32 4, %v1678
    %v1680 = vrot.slane %v34, %v1679
    %v1681 = vadd.f32 %v1675, %v1680
    %v1682 = vadd.f32 %v1676, %v1680
    %v1683 = vpack.c.bf16 %v1682, %v1681
    %v1684 = vld [vmem:[%s4] sm:$0xf]
    %v1685 = vld [vmem:[%s4 + $0x4] sm:$0xf]
    %v1686 = vld [vmem:[%s4 + $0x8] sm:$0xf]
    %v1687 = vld [vmem:[%s4 + $0xc] sm:$0xf]
    %v1688 = vld [vmem:[%s8] sm:$0x1]
    %v1690 = vlaneseq
    %v1691 = vshrl.u32 %v1690, 7
    %v1692 = vsub.s32 0, %v1691
    %v1693 = vrot.slane %v1688, %v1692
    %v1699 = vunpack.c.l.b16 %v1684
    %v1700 = vunpack.c.l.b16 %v1685
    %v1701 = vunpack.c.l.b16 %v1686
    %v1702 = vunpack.c.l.b16 %v1687
    %v1703 = vpack.c.b16 %v1700, %v1699
    %v1704 = vpack.c.b16 %v1702, %v1701
    %v1708 = vsel %vm115, %v1683, 0
    %1710 = vmatprep.subr.bf16.mxu0 0
    %1711 = vmatpush1.bf16.msra.mxu0 %v1703
    %1712 = vmatprep.subr.bf16.mxu0 0
    %1713 = vmatpush1.bf16.msra.mxu0 %v1704
    %1714 = vmatprep.subr.bf16.mxu0 0
    %1715 = vmatpush1.bf16.msra.mxu0 0
    %1716 = vmatprep.subr.bf16.mxu0 0
    %1717 = vmatpush1.bf16.msra.mxu0 0
    %1718 = vmatprep.subr.bf16.mxu0 0
    %1719 = vmatpush1.bf16.msra.mxu0 0
    %1720 = vmatprep.subr.bf16.mxu0 0
    %1721 = vmatpush1.bf16.msra.mxu0 0
    %1722 = vmatprep.subr.bf16.mxu0 0
    %1723 = vmatpush1.bf16.msra.mxu0 0
    %1724 = vmatprep.subr.bf16.mxu0 0
    %1725 = vmatpush1.bf16.msra.mxu0 0
    %1726 = vmatprep.subr.bf16.mxu0 0
    %1727 = vmatpush1.bf16.msra.mxu0 0
    %1728 = vmatprep.subr.bf16.mxu0 0
    %1729 = vmatpush1.bf16.msra.mxu0 0
    %1730 = vmatprep.subr.bf16.mxu0 0
    %1731 = vmatpush1.bf16.msra.mxu0 0
    %1732 = vmatprep.subr.bf16.mxu0 0
    %1733 = vmatpush1.bf16.msra.mxu0 0
    %1734 = vmatprep.subr.bf16.mxu0 0
    %1735 = vmatpush1.bf16.msra.mxu0 0
    %1736 = vmatprep.subr.bf16.mxu0 0
    %1737 = vmatpush1.bf16.msra.mxu0 0
    %1738 = vmatprep.subr.bf16.mxu0 0
    %1739 = vmatpush1.bf16.msra.mxu0 0
    %1740 = vmatprep.subr.bf16.mxu0 0
    %1741 = vmatpush1.bf16.msra.mxu0 0
    %1742 = vmatprep.mubr.bf16.mxu0 0
    %1743 = vmatmul.mubr.bf16.gmra.mrb[0].mxu0 %v1708
    %v1744 = vpop.f32.mrb[0].mxu0
    %v1745 = vadd.f32 %v1693, %v1744
    %v1746 = vpop.f32.mrb[0].mxu0
    %v1747 = vpop.f32.mrb[0].mxu0
    %v1748 = vadd.f32 %v1693, %v1747
    %v1749 = vpop.f32.mrb[0].mxu0
    %1750 = vdwg.mxu0
    %v1751 = vmax.f32 %v1745, 0.0
    %v1752 = vmax.f32 %v1748, 0.0
    %v1753 = vpack.c.bf16 %v1752, %v1751
    %v1754 = vld [vmem:[%s5] sm:$0xf]
    %v1755 = vld [vmem:[%s5 + $0x4] sm:$0xf]
    %v1756 = vld [vmem:[%s5 + $0x8] sm:$0xf]
    %v1757 = vld [vmem:[%s5 + $0xc] sm:$0xf]
    %v1758 = vld [vmem:[%s5 + $0x10] sm:$0xf]
    %v1759 = vld [vmem:[%s5 + $0x14] sm:$0xf]
    %v1760 = vld [vmem:[%s5 + $0x18] sm:$0xf]
    %v1761 = vld [vmem:[%s5 + $0x1c] sm:$0xf]
    %v1762 = vld [vmem:[%s5 + $0x20] sm:$0xf]
    %v1763 = vld [vmem:[%s5 + $0x24] sm:$0xf]
    %v1764 = vld [vmem:[%s5 + $0x28] sm:$0xf]
    %v1765 = vld [vmem:[%s5 + $0x2c] sm:$0xf]
    %v1766 = vld [vmem:[%s5 + $0x30] sm:$0xf]
    %v1767 = vld [vmem:[%s5 + $0x34] sm:$0xf]
    %v1768 = vld [vmem:[%s5 + $0x38] sm:$0xf]
    %v1769 = vld [vmem:[%s5 + $0x3c] sm:$0xf]
    %v1770 = vlaneseq
    %v1771 = vshrl.u32 %v1770, 7
    %v1772 = vsub.s32 5, %v1771
    %v1773 = vrot.slane %v34, %v1772
    %v1790 = vunpack.c.l.b16 %v1754
    %v1791 = vunpack.c.l.b16 %v1755
    %v1792 = vunpack.c.l.b16 %v1756
    %v1793 = vunpack.c.l.b16 %v1757
    %v1794 = vunpack.c.l.b16 %v1758
    %v1795 = vunpack.c.l.b16 %v1759
    %v1796 = vunpack.c.l.b16 %v1760
    %v1797 = vunpack.c.l.b16 %v1761
    %v1798 = vunpack.c.l.b16 %v1762
    %v1799 = vunpack.c.l.b16 %v1763
    %v1800 = vunpack.c.l.b16 %v1764
    %v1801 = vunpack.c.l.b16 %v1765
    %v1802 = vunpack.c.l.b16 %v1766
    %v1803 = vunpack.c.l.b16 %v1767
    %v1804 = vunpack.c.l.b16 %v1768
    %v1805 = vunpack.c.l.b16 %v1769
    %v1806 = vpack.c.b16 %v1791, %v1790
    %v1807 = vpack.c.b16 %v1793, %v1792
    %v1808 = vpack.c.b16 %v1795, %v1794
    %v1809 = vpack.c.b16 %v1797, %v1796
    %v1810 = vpack.c.b16 %v1799, %v1798
    %v1811 = vpack.c.b16 %v1801, %v1800
    %v1812 = vpack.c.b16 %v1803, %v1802
    %v1813 = vpack.c.b16 %v1805, %v1804
    %1822 = vmatprep.subr.bf16.mxu0 0
    %1823 = vmatpush1.bf16.msra.mxu0 %v1806
    %1824 = vmatprep.subr.bf16.mxu0 0
    %1825 = vmatpush1.bf16.msra.mxu0 %v1807
    %1826 = vmatprep.subr.bf16.mxu0 0
    %1827 = vmatpush1.bf16.msra.mxu0 %v1808
    %1828 = vmatprep.subr.bf16.mxu0 0
    %1829 = vmatpush1.bf16.msra.mxu0 %v1809
    %1830 = vmatprep.subr.bf16.mxu0 0
    %1831 = vmatpush1.bf16.msra.mxu0 %v1810
    %1832 = vmatprep.subr.bf16.mxu0 0
    %1833 = vmatpush1.bf16.msra.mxu0 %v1811
    %1834 = vmatprep.subr.bf16.mxu0 0
    %1835 = vmatpush1.bf16.msra.mxu0 %v1812
    %1836 = vmatprep.subr.bf16.mxu0 0
    %1837 = vmatpush1.bf16.msra.mxu0 %v1813
    %1838 = vmatprep.subr.bf16.mxu0 0
    %1839 = vmatpush1.bf16.msra.mxu0 0
    %1840 = vmatprep.subr.bf16.mxu0 0
    %1841 = vmatpush1.bf16.msra.mxu0 0
    %1842 = vmatprep.subr.bf16.mxu0 0
    %1843 = vmatpush1.bf16.msra.mxu0 0
    %1844 = vmatprep.subr.bf16.mxu0 0
    %1845 = vmatpush1.bf16.msra.mxu0 0
    %1846 = vmatprep.subr.bf16.mxu0 0
    %1847 = vmatpush1.bf16.msra.mxu0 0
    %1848 = vmatprep.subr.bf16.mxu0 0
    %1849 = vmatpush1.bf16.msra.mxu0 0
    %1850 = vmatprep.subr.bf16.mxu0 0
    %1851 = vmatpush1.bf16.msra.mxu0 0
    %1852 = vmatprep.subr.bf16.mxu0 0
    %1853 = vmatpush1.bf16.msra.mxu0 0
    %1854 = vmatprep.mubr.bf16.mxu0 0
    %1855 = vmatmul.mubr.bf16.gmra.mrb[0].mxu0 %v1753
    %v1856 = vpop.f32.mrb[0].mxu0
    %v1857 = vadd.f32 %v1773, %v1856
    %v1858 = vpop.f32.mrb[0].mxu0
    %v1859 = vpop.f32.mrb[0].mxu0
    %v1860 = vadd.f32 %v1773, %v1859
    %v1861 = vpop.f32.mrb[0].mxu0
    %1862 = vdwg.mxu0
    %v1863 = vadd.f32 %v1681, %v1857
    %v1864 = vadd.f32 %v1682, %v1860
    %v1865 = vsel %vm115, %v1863, 0.0
    %1866 = vadd.xlane.f32.xlu0 %v1865
    %v1867 = vpop.xlane.xlu0 %1866
    %v1868 = vsel %vm115, %v1864, 0.0
    %1869 = vadd.xlane.f32.xlu0 %v1868
    %v1870 = vpop.xlane.xlu0 %1869
    %v1871 = vmul.f32 %v1867, %v122
    %v1872 = vmul.f32 %v1870, %v122
    %v1873 = vsub.f32 %v1863, %v1871
    %v1874 = vsub.f32 %v1864, %v1872
    %v1875 = vmul.f32 %v1873, %v1873
    %v1876 = vmul.f32 %v1874, %v1874
    %v1877 = vsel %vm115, %v1875, 0.0
    %1878 = vadd.xlane.f32.xlu0 %v1877
    %v1879 = vpop.xlane.xlu0 %1878
    %v1880 = vsel %vm115, %v1876, 0.0
    %1881 = vadd.xlane.f32.xlu0 %v1880
    %v1882 = vpop.xlane.xlu0 %1881
    %v1883 = vmul.f32 %v1879, %v122
    %v1884 = vmul.f32 %v1882, %v122
    %v1885 = vadd.f32 %v1883, 1e-05
    %v1886 = vadd.f32 %v1884, 1e-05
    %v1887 = vrsqrt.pop %v1885
    %v1888 = vrsqrt.pop %v1886
    %v1889 = vmul.f32 %v1873, %v1887
    %v1890 = vmul.f32 %v1874, %v1888
    %v1891 = vlaneseq
    %v1892 = vshrl.u32 %v1891, 7
    %v1893 = vsub.s32 6, %v1892
    %v1894 = vrot.slane %v34, %v1893
    %v1895 = vmul.f32 %v1889, %v1894
    %v1896 = vmul.f32 %v1890, %v1894
    %v1897 = vlaneseq
    %v1898 = vshrl.u32 %v1897, 7
    %v1899 = vsub.s32 7, %v1898
    %v1900 = vrot.slane %v34, %v1899
    %v1901 = vadd.f32 %v1895, %v1900
    %v1902 = vadd.f32 %v1896, %v1900
    %1903 = vst.msk [vmem:[#allocation2] sm:$0xff] %vm115, %v1901
    %1904 = vst.msk [vmem:[#allocation2 + $0x8] sm:$0xff] %vm115, %v1902
    // Predicated region
    $region38: #{tpu_custom_call.1} parent=1 // pred_check
      _
    $region39: #{tpu_custom_call.1} parent=1 // pred_check_branch
      %1906 = sbr.rel (0) target = $region41
    $region40: #{tpu_custom_call.1} parent=1 // pred_region
      %s1908 = ssub.s32 256, 256
      %1909 = vsyncadd [#allocation3], %s1908
      %s1910 = sshll.u32 [#allocation2], 4
      %s1911 = int_to_ptr.vmem [resolvable:$true] %s1910
      %1916 = dma.vmem_to_hbm [thread:$0]  %s1911, 256, %s9, [#allocation3], 128, 128, 8
    $region41: #{tpu_custom_call.1} parent=1 // pred_fallthru
      _
    // Predicated region
    $region42: #{tpu_custom_call.1} parent=1 // pred_check
      _
    $region43: #{tpu_custom_call.1} parent=1 // pred_check_branch
      %1918 = sbr.rel (0) target = $region45
    $region44: #{tpu_custom_call.1} parent=1 // pred_region
      %1919 = dma.done [#allocation3], 256
    $region45: #{tpu_custom_call.1} parent=1 // pred_fallthru
      _
    %1920 = vsyncpa [#allocation3], 1

</llo_original>
